<compile_context>
chip_gen: v7x
topology: tpu7x:2x2x1
jax: 0.10.0
libtpu: 0.0.40
codegen_flags: <defaults>
</compile_context>

<pallas_src>
import functools

import jax
import jax.numpy as jnp
from jax.experimental import pallas as pl
from jax.experimental.pallas import tpu as pltpu


# ----------------------------------------------------------------------------
# Helpers
# ----------------------------------------------------------------------------
def _row_tile(H, W, Cout, pool):
    """Largest row block (divides H, even if pooling) with a <=128 KiB f32 acc."""
    budget = 128 * 1024
    for tr in range(H, 0, -1):
        if H % tr:
            continue
        if pool and tr % 2:
            continue
        if tr * W * Cout * 4 <= budget:
            return tr
    return 2 if pool else 1


def _for_each_block(nblk, fn):
    # Unroll short static trip counts; lax.fori_loop otherwise.
    if nblk <= 4:
        for blk in range(nblk):
            fn(blk)
    else:
        def body(blk, carry):
            fn(blk)
            return carry
        jax.lax.fori_loop(0, nblk, body, 0)


# ----------------------------------------------------------------------------
# Fused Conv3x3 (stride 1, pad 1) + bias + ReLU (+ optional 2x2/2 MaxPool)
# ----------------------------------------------------------------------------
def _conv3x3_relu_pool_kernel(x_ref, w_ref, b_ref, o_ref, xcol_ref, *, tr, pool):
    # x_ref   : (1, H, W, Cin)    unpadded activations, one image
    # w_ref   : (3, 3*Cin, Cout)  indexed (kh, kw*Cin + cin, cout)
    # b_ref   : (1, Cout)
    # o_ref   : (1, Ho, Wo, Cout) Ho,Wo = H,W (no pool) or H/2,W/2 (fused pool)
    # xcol_ref: (H+2, W, 3*Cin)   scratch: row-padded, kw-folded input
    H, W = x_ref.shape[1], x_ref.shape[2]
    Cout = o_ref.shape[3]
    K = xcol_ref.shape[2]                                   # 3 * Cin

    # Build the kw-folded, row-padded input once per image: <=3 shifted copies
    # (vs 9 per-tap window copies) and the halo never round-trips through HBM.
    x = x_ref[0]                                            # (H, W, Cin)
    zw = jnp.zeros_like(x)
    x3w = jnp.concatenate([zw, x, zw], axis=1)              # (H, 3W, Cin)
    xl = x3w[:, W - 1:2 * W - 1, :]                         # x(h, w-1), 0 at w=0
    xr = x3w[:, W + 1:2 * W + 1, :]                         # x(h, w+1), 0 at w=W-1
    xcat = jnp.concatenate([xl, x, xr], axis=-1)            # (H, W, 3*Cin)

    zero_row = jnp.zeros((W, K), jnp.float32)
    xcol_ref[0, :, :] = zero_row                            # top halo row
    xcol_ref[H + 1, :, :] = zero_row                        # bottom halo row
    xcol_ref[pl.ds(1, H), :, :] = xcat

    def compute_block(blk):
        r0 = blk * tr                                       # first output row
        acc = jnp.zeros((tr * W, Cout), jnp.float32)
        for kh in range(3):                                 # 3 leading-dim slices
            lhs = xcol_ref[pl.ds(r0 + kh, tr), :, :].reshape(tr * W, K)
            acc = acc + jnp.dot(lhs, w_ref[kh],
                                preferred_element_type=jnp.float32)
        y = jnp.maximum(acc + b_ref[...], 0.0)              # bias + ReLU
        if pool:                                            # fused 2x2/2 maxpool
            y = jnp.max(y.reshape(tr // 2, 2, W, Cout), axis=1)
            y = jnp.max(y.reshape(tr // 2, W // 2, 2, Cout), axis=2)
            o_ref[0, pl.ds(blk * (tr // 2), tr // 2), :, :] = y
        else:
            o_ref[0, pl.ds(r0, tr), :, :] = y.reshape(tr, W, Cout)

    _for_each_block(H // tr, compute_block)


def conv3x3_relu_pool(x, w, b, *, pool):
    N, H, W, Cin = x.shape
    Cout = w.shape[-1]
    assert w.shape[:3] == (3, 3, Cin)
    if pool:
        assert H % 2 == 0 and W % 2 == 0
    Ho, Wo = (H // 2, W // 2) if pool else (H, W)
    tr = _row_tile(H, W, Cout, pool)
    w_folded = w.reshape(3, 3 * Cin, Cout)                  # free row-major reshape
    b2 = b.reshape(1, Cout)

    # Scoped-VMEM budget: double-buffered blocks + scratch + headroom, capped
    # well under v7x's 64 MiB physical VMEM.
    block_bytes = 4 * (H * W * Cin + 9 * Cin * Cout + Cout + Ho * Wo * Cout)
    scratch_bytes = 4 * (H + 2) * W * 3 * Cin
    vmem_limit = min(48 << 20, 2 * block_bytes + scratch_bytes + (16 << 20))

    kernel = functools.partial(_conv3x3_relu_pool_kernel, tr=tr, pool=pool)
    return pl.pallas_call(
        kernel,
        out_shape=jax.ShapeDtypeStruct((N, Ho, Wo, Cout), jnp.float32),
        grid=(N,),
        in_specs=[
            pl.BlockSpec((1, H, W, Cin), lambda n: (n, 0, 0, 0)),
            pl.BlockSpec((3, 3 * Cin, Cout), lambda n: (0, 0, 0)),
            pl.BlockSpec((1, Cout), lambda n: (0, 0)),
        ],
        out_specs=pl.BlockSpec((1, Ho, Wo, Cout), lambda n: (n, 0, 0, 0)),
        scratch_shapes=[pltpu.VMEM((H + 2, W, 3 * Cin), jnp.float32)],
        compiler_params=pltpu.CompilerParams(
            dimension_semantics=("parallel",),
            vmem_limit_bytes=vmem_limit),
    )(x, w_folded, b2)


# ----------------------------------------------------------------------------
# Stem conv (Cin=3): K=27 im2col built in glue, one matmul per row block
# ----------------------------------------------------------------------------
def _stem_conv_kernel(x_ref, w_ref, b_ref, o_ref, *, tr):
    # x_ref: (1, H, W, 9*Cin), w_ref: (9*Cin, Cout), b_ref: (1, Cout)
    H, W, K = x_ref.shape[1], x_ref.shape[2], x_ref.shape[3]
    Cout = o_ref.shape[3]

    def compute_block(blk):
        r0 = blk * tr
        lhs = x_ref[0, pl.ds(r0, tr), :, :].reshape(tr * W, K)
        y = jnp.dot(lhs, w_ref[...], preferred_element_type=jnp.float32)
        y = jnp.maximum(y + b_ref[...], 0.0)
        o_ref[0, pl.ds(r0, tr), :, :] = y.reshape(tr, W, Cout)

    _for_each_block(H // tr, compute_block)


def stem_conv3x3_relu(x, w, b):
    N, H, W, Cin = x.shape
    Cout = w.shape[-1]
    K = 9 * Cin
    # Glue im2col is cheap here (3-channel input is tiny) and yields one K=27
    # MXU contraction instead of nine K=3 matmuls.
    xp = jnp.pad(x, ((0, 0), (1, 1), (1, 1), (0, 0)))
    cols = [xp[:, kh:kh + H, kw:kw + W, :] for kh in range(3) for kw in range(3)]
    xim = jnp.concatenate(cols, axis=-1)                    # (N, H, W, 9*Cin)
    tr = _row_tile(H, W, Cout, pool=False)
    kernel = functools.partial(_stem_conv_kernel, tr=tr)
    return pl.pallas_call(
        kernel,
        out_shape=jax.ShapeDtypeStruct((N, H, W, Cout), jnp.float32),
        grid=(N,),
        in_specs=[
            pl.BlockSpec((1, H, W, K), lambda n: (n, 0, 0, 0)),
            pl.BlockSpec((K, Cout), lambda n: (0, 0)),
            pl.BlockSpec((1, Cout), lambda n: (0, 0)),
        ],
        out_specs=pl.BlockSpec((1, H, W, Cout), lambda n: (n, 0, 0, 0)),
        compiler_params=pltpu.CompilerParams(
            dimension_semantics=("parallel",)),
    )(xim, w.reshape(K, Cout), b.reshape(1, Cout))


# ----------------------------------------------------------------------------
# AdaptiveAvgPool2d(1) + Linear(512 -> 200)
# ----------------------------------------------------------------------------
def _gap_linear_kernel(x_ref, w_ref, b_ref, o_ref):
    N, Hf, Wf, C = x_ref.shape
    x = x_ref[...].reshape(N, Hf * Wf, C)
    gap = jnp.sum(x, axis=1) * (1.0 / float(Hf * Wf))       # (N, C)
    o_ref[...] = jnp.dot(gap, w_ref[...],
                         preferred_element_type=jnp.float32) + b_ref[...]


def gap_linear(feat, w, b):
    N, Hf, Wf, C = feat.shape
    Cout = w.shape[1]
    return pl.pallas_call(
        _gap_linear_kernel,
        out_shape=jax.ShapeDtypeStruct((N, Cout), jnp.float32),
        grid=(1,),
        in_specs=[
            pl.BlockSpec((N, Hf, Wf, C), lambda i: (0, 0, 0, 0)),
            pl.BlockSpec((C, Cout), lambda i: (0, 0)),
            pl.BlockSpec((1, Cout), lambda i: (0, 0)),
        ],
        out_specs=pl.BlockSpec((N, Cout), lambda i: (0, 0)),
    )(feat, w, b.reshape(1, Cout))


# ----------------------------------------------------------------------------
# FGIAnet forward
# ----------------------------------------------------------------------------
# torchvision VGG16 `features` config; 'M' = MaxPool2d(2, 2).
VGG16_CFG = [64, 64, "M", 128, 128, "M", 256, 256, 256, "M",
             512, 512, 512, "M", 512, 512, 512, "M"]


def init_params(key):
    # Deterministic synthetic init (the PyTorch module was not pretrained).
    # TODO(synk): loading a torchvision VGG16 checkpoint is out of scope here.
    convs = []
    cin = 3
    for item in VGG16_CFG:
        if item == "M":
            continue
        cout = item
        key, kw = jax.random.split(key)
        std = (2.0 / (9.0 * cin)) ** 0.5          # Kaiming-like, keeps activations finite
        w = std * jax.random.normal(kw, (3, 3, cin, cout), jnp.float32)
        b = jnp.zeros((cout,), jnp.float32)
        convs.append((w, b))
        cin = cout
    key, kc = jax.random.split(key)
    cls_w = 0.01 * jax.random.normal(kc, (512, 200), jnp.float32)   # normal_(0, 0.01)
    cls_b = jnp.zeros((200,), jnp.float32)                          # constant_(0)
    return convs, cls_w, cls_b


def fgianet_forward(imgs, convs, cls_w, cls_b):
    # imgs: (N, H, W, 3) NHWC float32
    x = imgs
    outs = []
    conv_i = 0
    i = 0
    n = len(VGG16_CFG)
    while i < n:
        assert VGG16_CFG[i] != "M"
        pool = (i + 1 < n) and (VGG16_CFG[i + 1] == "M")    # fuse the next MaxPool
        w, b = convs[conv_i]
        if conv_i == 0:
            assert not pool
            x = stem_conv3x3_relu(x, w, b)
        else:
            x = conv3x3_relu_pool(x, w, b, pool=pool)
        conv_i += 1
        if conv_i == 12:              # features[27]: ReLU after conv5_2
            outs.append(x)
        i += 2 if pool else 1
    outs.append(x)                    # features[30]: final MaxPool output
    img_f = gap_linear(x, cls_w, cls_b)
    return outs, img_f


# ----------------------------------------------------------------------------
# Pure-JAX reference (for a loose structural correctness check)
# ----------------------------------------------------------------------------
def _reference_forward(imgs, convs, cls_w, cls_b):
    x = imgs
    outs = []
    ci = 0
    for item in VGG16_CFG:
        if item == "M":
            x = jax.lax.reduce_window(x, -jnp.inf, jax.lax.max,
                                      (1, 2, 2, 1), (1, 2, 2, 1), "VALID")
        else:
            w, b = convs[ci]
            x = jax.lax.conv_general_dilated(
                x, w, window_strides=(1, 1), padding="SAME",
                dimension_numbers=("NHWC", "HWIO", "NHWC"),
                precision=jax.lax.Precision.HIGHEST)
            x = jnp.maximum(x + b, 0.0)
            ci += 1
            if ci == 12:
                outs.append(x)
    outs.append(x)
    gap = jnp.mean(x, axis=(1, 2))
    img_f = jnp.dot(gap, cls_w, precision=jax.lax.Precision.HIGHEST) + cls_b
    return outs, img_f


def _assert_close(a, b, what):
    err = float(jnp.max(jnp.abs(a - b)))
    scale = float(jnp.max(jnp.abs(b))) + 1.0
    assert err <= 5e-2 * scale, f"{what}: max abs err {err} (scale {scale})"


if __name__ == "__main__":
    key = jax.random.PRNGKey(0)
    pkey, xkey = jax.random.split(key)
    convs, cls_w, cls_b = init_params(pkey)

    # Small deterministic input: batch=2, 3 channels, 32x32 spatial (NHWC).
    imgs = jax.random.normal(xkey, (2, 32, 32, 3), jnp.float32)

    outs, img_f = fgianet_forward(imgs, convs, cls_w, cls_b)
    for o in outs:
        jax.block_until_ready(o)
    jax.block_until_ready(img_f)

    # Shapes implied by the PyTorch forward (NCHW (2,512,2,2) and (2,512,1,1)).
    assert outs[0].shape == (2, 2, 2, 512)   # relu5_2
    assert outs[1].shape == (2, 1, 1, 512)   # pool5
    assert img_f.shape == (2, 200)

    # Loose numeric check vs the pure-JAX f32 reference (catches structural bugs).
    ref_outs, ref_img_f = _reference_forward(imgs, convs, cls_w, cls_b)
    _assert_close(outs[0], ref_outs[0], "relu5_2")
    _assert_close(outs[1], ref_outs[1], "pool5")
    _assert_close(img_f, ref_img_f, "img_f")

    print("KERNEL_OK")
</pallas_src>

<mosaic_0001>
module attributes {stable_mosaic.version = 11 : i64} {
  func.func @_stem_conv_kernel(%arg0: i32, %arg1: memref<1x32x32x27xf32, #tpu.memory_space<vmem>>, %arg2: memref<27x64xf32, #tpu.memory_space<vmem>>, %arg3: memref<1x64xf32, #tpu.memory_space<vmem>>, %arg4: memref<1x32x32x64xf32, #tpu.memory_space<vmem>>) attributes {dimension_semantics = [#tpu.dimension_semantics<parallel>], iteration_bounds = array<i64: 2>, scalar_prefetch = 0 : i64, scratch_operands = 0 : i64, tpu.core_type = #tpu.core_type<tc>, window_params = [{transform_indices = @transform_0, window_bounds = array<i64: 1, 32, 32, 27>}, {pipeline_mode = #tpu.pipeline_mode<synchronous>, transform_indices = @transform_1, window_bounds = array<i64: 27, 64>}, {pipeline_mode = #tpu.pipeline_mode<synchronous>, transform_indices = @transform_2, window_bounds = array<i64: 1, 64>}, {transform_indices = @transform_3, window_bounds = array<i64: 1, 32, 32, 64>}]} {
    %c0 = arith.constant 0 : index
    %c0_0 = arith.constant 0 : index
    %c0_1 = arith.constant 0 : index
    %c0_2 = arith.constant 0 : index
    %0 = vector.load %arg1[%c0, %c0_0, %c0_1, %c0_2] : memref<1x32x32x27xf32, #tpu.memory_space<vmem>>, vector<1x16x32x27xf32>
    %1 = vector.shape_cast %0 : vector<1x16x32x27xf32> to vector<16x32x27xf32>
    %2 = vector.shape_cast %1 : vector<16x32x27xf32> to vector<512x27xf32>
    %c0_3 = arith.constant 0 : index
    %c0_4 = arith.constant 0 : index
    %3 = vector.load %arg2[%c0_3, %c0_4] : memref<27x64xf32, #tpu.memory_space<vmem>>, vector<27x64xf32>
    %cst = arith.constant dense<0.000000e+00> : vector<512x64xf32>
    %4 = tpu.matmul %2, %3, %cst {dimension_numbers = #tpu.dot_dimension_numbers<[1], [0], [0], [1], [0, 0, 1, 1], [], []>} : vector<512x27xf32>, vector<27x64xf32>, vector<512x64xf32> -> vector<512x64xf32>
    %c0_5 = arith.constant 0 : index
    %c0_6 = arith.constant 0 : index
    %5 = vector.load %arg3[%c0_5, %c0_6] : memref<1x64xf32, #tpu.memory_space<vmem>>, vector<1x64xf32>
    %6 = vector.broadcast %5 : vector<1x64xf32> to vector<512x64xf32>
    %7 = arith.addf %4, %6 : vector<512x64xf32>
    %cst_7 = arith.constant 0.000000e+00 : f32
    %8 = vector.broadcast %cst_7 : f32 to vector<512x64xf32>
    %9 = arith.maximumf %7, %8 : vector<512x64xf32>
    %10 = vector.shape_cast %9 : vector<512x64xf32> to vector<16x32x64xf32>
    %c0_8 = arith.constant 0 : index
    %c0_9 = arith.constant 0 : index
    %c0_10 = arith.constant 0 : index
    %c0_11 = arith.constant 0 : index
    %11 = vector.load %arg4[%c0_8, %c0_9, %c0_10, %c0_11] : memref<1x32x32x64xf32, #tpu.memory_space<vmem>>, vector<1x16x32x64xf32>
    %12 = vector.shape_cast %11 : vector<1x16x32x64xf32> to vector<16x32x64xf32>
    %13 = vector.shape_cast %10 : vector<16x32x64xf32> to vector<1x16x32x64xf32>
    tpu.vector_store %arg4[%c0_8, %c0_9, %c0_10, %c0_11], %13 {strides = array<i32>} : memref<1x32x32x64xf32, #tpu.memory_space<vmem>>, vector<1x16x32x64xf32>,
    %c0_12 = arith.constant 0 : index
    %c16 = arith.constant 16 : index
    %c0_13 = arith.constant 0 : index
    %c0_14 = arith.constant 0 : index
    %14 = vector.load %arg1[%c0_12, %c16, %c0_13, %c0_14] : memref<1x32x32x27xf32, #tpu.memory_space<vmem>>, vector<1x16x32x27xf32>
    %15 = vector.shape_cast %14 : vector<1x16x32x27xf32> to vector<16x32x27xf32>
    %16 = vector.shape_cast %15 : vector<16x32x27xf32> to vector<512x27xf32>
    %c0_15 = arith.constant 0 : index
    %c0_16 = arith.constant 0 : index
    %17 = vector.load %arg2[%c0_15, %c0_16] : memref<27x64xf32, #tpu.memory_space<vmem>>, vector<27x64xf32>
    %cst_17 = arith.constant dense<0.000000e+00> : vector<512x64xf32>
    %18 = tpu.matmul %16, %17, %cst_17 {dimension_numbers = #tpu.dot_dimension_numbers<[1], [0], [0], [1], [0, 0, 1, 1], [], []>} : vector<512x27xf32>, vector<27x64xf32>, vector<512x64xf32> -> vector<512x64xf32>
    %c0_18 = arith.constant 0 : index
    %c0_19 = arith.constant 0 : index
    %19 = vector.load %arg3[%c0_18, %c0_19] : memref<1x64xf32, #tpu.memory_space<vmem>>, vector<1x64xf32>
    %20 = vector.broadcast %19 : vector<1x64xf32> to vector<512x64xf32>
    %21 = arith.addf %18, %20 : vector<512x64xf32>
    %cst_20 = arith.constant 0.000000e+00 : f32
    %22 = vector.broadcast %cst_20 : f32 to vector<512x64xf32>
    %23 = arith.maximumf %21, %22 : vector<512x64xf32>
    %24 = vector.shape_cast %23 : vector<512x64xf32> to vector<16x32x64xf32>
    %c0_21 = arith.constant 0 : index
    %c16_22 = arith.constant 16 : index
    %c0_23 = arith.constant 0 : index
    %c0_24 = arith.constant 0 : index
    %25 = vector.load %arg4[%c0_21, %c16_22, %c0_23, %c0_24] : memref<1x32x32x64xf32, #tpu.memory_space<vmem>>, vector<1x16x32x64xf32>
    %26 = vector.shape_cast %25 : vector<1x16x32x64xf32> to vector<16x32x64xf32>
    %27 = vector.shape_cast %24 : vector<16x32x64xf32> to vector<1x16x32x64xf32>
    tpu.vector_store %arg4[%c0_21, %c16_22, %c0_23, %c0_24], %27 {strides = array<i32>} : memref<1x32x32x64xf32, #tpu.memory_space<vmem>>, vector<1x16x32x64xf32>,
    return
  }
  func.func @transform_0(%arg0: i32) -> (i32, i32, i32, i32) {
    %c0_i32 = arith.constant 0 : i32
    %c0_i32_0 = arith.constant 0 : i32
    %c0_i32_1 = arith.constant 0 : i32
    %c0_i32_2 = arith.constant 0 : i32
    return %arg0, %c0_i32, %c0_i32_0, %c0_i32_1 : i32, i32, i32, i32
  }
  func.func @transform_1(%arg0: i32) -> (i32, i32) {
    %c0_i32 = arith.constant 0 : i32
    %c0_i32_0 = arith.constant 0 : i32
    %c0_i32_1 = arith.constant 0 : i32
    return %c0_i32, %c0_i32_0 : i32, i32
  }
  func.func @transform_2(%arg0: i32) -> (i32, i32) {
    %c0_i32 = arith.constant 0 : i32
    %c0_i32_0 = arith.constant 0 : i32
    %c0_i32_1 = arith.constant 0 : i32
    return %c0_i32, %c0_i32_0 : i32, i32
  }
  func.func @transform_3(%arg0: i32) -> (i32, i32, i32, i32) {
    %c0_i32 = arith.constant 0 : i32
    %c0_i32_0 = arith.constant 0 : i32
    %c0_i32_1 = arith.constant 0 : i32
    %c0_i32_2 = arith.constant 0 : i32
    return %arg0, %c0_i32, %c0_i32_0, %c0_i32_1 : i32, i32, i32, i32
  }
}

</mosaic_0001>

<llo_original>
// kernel: tpu_custom_call.1
$region0: #{tpu_custom_call.1}
  #allocation0 [shape = 'u32[]', space=smem, size = 0x4, offset = 0x4, fixed_abs, tag = 'smem constant byte address 0x4 - core index']
  #allocation1 [shape = 'u32[144,128]{1,0:T(1,128)}', space=vmem, size = 0x12000, scoped, tag = 'internal scratch']
  %s0 = inlined_call_operand.vmem [shape: f32[2,32,32,27], index: 0, kind: input, shape index: {}]
  %s1 = inlined_call_operand.vmem [shape: f32[27,64], index: 1, kind: input, shape index: {}]
  %s2 = inlined_call_operand.vmem [shape: f32[1,64], index: 2, kind: input, shape index: {}]
  %s3 = inlined_call_operand.hbm [shape: f32[2,32,32,64], index: 3, kind: output, shape index: {}]
  %s4 = sld [smem:[#allocation0]]
  $region45: #{tpu_custom_call.1} parent=0
    _
  %s6 = ssub.s32 1, %s4
  %s7 = scalar_select 0, %s6, %s4
  $region1: #{tpu_custom_call.1} parent=0
    #allocation2 [shape = 'u8[1048576]{0}', space=vmem, size = 0x100000, scoped, tag = 'output window, operand 0']
    #allocation3 [shape = 's32[2]{0}', space=sflag, size = 0x8, scoped, tag = 'scoped memory for tpu_custom_call.1']
    %8 = vsyncpa [#allocation3], 0
    %s9 = scalar_lea.sflag [#allocation3], 1
    %10 = vsyncpa %s9, 0
    loop: start=0, step=1, limit=4
    $region2: #{tpu_custom_call.1} parent=1 // loop_pre_header
      _
    $region3: #{tpu_custom_call.1} parent=1 // loop_header
      %s12 = sphi 0, %s16
      %p13 = scmp.ge.s32.totalorder %s12, 4
      %s22 = sphi 0, %s24
      %s25 = sphi 0, %s22
      %s26 = sphi 0, %s25
      %s42 = sphi 0, %s26
      %s46 = sphi 0, %s46
      %s48 = sphi 0, %s46
      %s49 = sphi 0, %s48
      %s63 = sphi 0, %s49
      %s67 = sphi 0, %s67
      %s69 = sphi 0, %s67
      %s70 = sphi 0, %s69
      %s84 = sphi 0, %s70
      %s90 = sphi 0, %s92
      %s93 = sphi 0, %s90
      %s94 = sphi 0, %s93
      %s110 = sphi 0, %s94
    $region4: #{tpu_custom_call.1} parent=1 // loop_header_branch
      %15 = sbr.rel (%p13) target = $region8
    $region5: #{tpu_custom_call.1} parent=1 // loop_body
      %s17 = ssub.s32 %s12, 1
      %s18 = ssub.s32 %s12, 2
      %s19 = sadd.s32 %s12, 1
      %s20 = ssub.s32 %s12, %s19
      %p21 = scmp.eq.s32.totalorder %s20, 0
      %s23 = sadd.s32 %s22, 1
      %s24 = scalar_select %p21, %s22, %s23
      %p27 = pneg %p21
      %p28 = scmp.eq.s32.totalorder %s12, 1
      %p29 = por %p27, %p28
      %p30 = scmp.ne.s32.totalorder %s22, %s25
      %p31 = scmp.eq.s32.totalorder %s12, 0
      %p32 = por %p30, %p31
      %p33 = scmp.ne.s32.totalorder %s22, %s25
      %p34 = scmp.eq.s32.totalorder %s17, 1
      %p35 = por %p33, %p34
      %p36 = scmp.ne.s32.totalorder %s25, %s26
      %p37 = scmp.eq.s32.totalorder %s17, 0
      %p38 = por %p36, %p37
      %p39 = scmp.ne.s32.totalorder %s25, %s26
      %p40 = scmp.eq.s32.totalorder %s18, 1
      %p41 = por %p39, %p40
      %p43 = scmp.ne.s32.totalorder %s26, %s42
      %p44 = scmp.eq.s32.totalorder %s18, 0
      %p45 = por %p43, %p44
      %s47 = sadd.s32 %s46, 1
      %p50 = scmp.eq.s32.totalorder %s12, 1
      %p51 = scmp.ne.s32.totalorder %s46, %s48
      %p52 = scmp.eq.s32.totalorder %s12, 0
      %p53 = por %p51, %p52
      %p54 = scmp.ne.s32.totalorder %s46, %s48
      %p55 = scmp.eq.s32.totalorder %s17, 1
      %p56 = por %p54, %p55
      %p57 = scmp.ne.s32.totalorder %s48, %s49
      %p58 = scmp.eq.s32.totalorder %s17, 0
      %p59 = por %p57, %p58
      %p60 = scmp.ne.s32.totalorder %s48, %s49
      %p61 = scmp.eq.s32.totalorder %s18, 1
      %p62 = por %p60, %p61
      %p64 = scmp.ne.s32.totalorder %s49, %s63
      %p65 = scmp.eq.s32.totalorder %s18, 0
      %p66 = por %p64, %p65
      %s68 = sadd.s32 %s67, 1
      %p71 = scmp.eq.s32.totalorder %s12, 1
      %p72 = scmp.ne.s32.totalorder %s67, %s69
      %p73 = scmp.eq.s32.totalorder %s12, 0
      %p74 = por %p72, %p73
      %p75 = scmp.ne.s32.totalorder %s67, %s69
      %p76 = scmp.eq.s32.totalorder %s17, 1
      %p77 = por %p75, %p76
      %p78 = scmp.ne.s32.totalorder %s69, %s70
      %p79 = scmp.eq.s32.totalorder %s17, 0
      %p80 = por %p78, %p79
      %p81 = scmp.ne.s32.totalorder %s69, %s70
      %p82 = scmp.eq.s32.totalorder %s18, 1
      %p83 = por %p81, %p82
      %p85 = scmp.ne.s32.totalorder %s70, %s84
      %p86 = scmp.eq.s32.totalorder %s18, 0
      %p87 = por %p85, %p86
      %s88 = ssub.s32 %s12, %s19
      %p89 = scmp.eq.s32.totalorder %s88, 0
      %s91 = sadd.s32 %s90, 1
      %s92 = scalar_select %p89, %s90, %s91
      %p95 = pneg %p89
      %p96 = scmp.eq.s32.totalorder %s12, 1
      %p97 = por %p95, %p96
      %p98 = scmp.ne.s32.totalorder %s90, %s93
      %p99 = scmp.eq.s32.totalorder %s12, 0
      %p100 = por %p98, %p99
      %p101 = scmp.ne.s32.totalorder %s90, %s93
      %p102 = scmp.eq.s32.totalorder %s17, 1
      %p103 = por %p101, %p102
      %p104 = scmp.ne.s32.totalorder %s93, %s94
      %p105 = scmp.eq.s32.totalorder %s17, 0
      %p106 = por %p104, %p105
      %p107 = scmp.ne.s32.totalorder %s93, %s94
      %p108 = scmp.eq.s32.totalorder %s18, 1
      %p109 = por %p107, %p108
      %p111 = scmp.ne.s32.totalorder %s94, %s110
      %p112 = scmp.eq.s32.totalorder %s18, 0
      %p113 = por %p111, %p112
      %p114 = scmp.le.s32.totalorder 1, %s12
      %p115 = scmp.lt.s32.totalorder %s12, 3
      %p116 = pnand %p114, %p115
      %p117 = pneg %p116
      // Predicated region
      $region9: #{tpu_custom_call.1} parent=5 // pred_check
        _
      $region10: #{tpu_custom_call.1} parent=5 // pred_check_branch
        %119 = sbr.rel (%p116) target = $region12
      $region11: #{tpu_custom_call.1} parent=5 // pred_region
        %s120 = ssub.s32 %s12, 1
        // Predicated region
        $region13: #{tpu_custom_call.1} parent=11 // pred_check
          %p121 = pneg %p59
        $region14: #{tpu_custom_call.1} parent=11 // pred_check_branch
          %123 = sbr.rel (%p121) target = $region16
        $region15: #{tpu_custom_call.1} parent=11 // pred_region
          _
        $region16: #{tpu_custom_call.1} parent=11 // pred_fallthru
          _
        // Predicated region
        $region17: #{tpu_custom_call.1} parent=11 // pred_check
          %p124 = pneg %p80
        $region18: #{tpu_custom_call.1} parent=11 // pred_check_branch
          %126 = sbr.rel (%p124) target = $region20
        $region19: #{tpu_custom_call.1} parent=11 // pred_region
          _
        $region20: #{tpu_custom_call.1} parent=11 // pred_fallthru
          _
      $region12: #{tpu_custom_call.1} parent=5 // pred_fallthru
        _
      %p127 = scmp.lt.s32.totalorder %s12, 2
      // Predicated region
      $region21: #{tpu_custom_call.1} parent=5 // pred_check
        %p128 = pneg %p127
      $region22: #{tpu_custom_call.1} parent=5 // pred_check_branch
        %130 = sbr.rel (%p128) target = $region24
      $region23: #{tpu_custom_call.1} parent=5 // pred_region
        // Predicated region
        $region25: #{tpu_custom_call.1} parent=23 // pred_check
          %p131 = pneg %p32
        $region26: #{tpu_custom_call.1} parent=23 // pred_check_branch
          %133 = sbr.rel (%p131) target = $region28
        $region27: #{tpu_custom_call.1} parent=23 // pred_region
          %p134 = scmp.lt.s32.totalorder %s12, 1
          %s135 = scalar_select %p134, %s12, 1
          %s136 = smul.addr %s135, 128
          %s137 = smul.addr %s136, 8
          %s138 = scalar_lea.vmem %s0, %s137
        $region28: #{tpu_custom_call.1} parent=23 // pred_fallthru
          _
      $region24: #{tpu_custom_call.1} parent=5 // pred_fallthru
        _
      %p139 = scmp.le.s32.totalorder 1, %s12
      %p140 = scmp.lt.s32.totalorder %s12, 3
      %p141 = pnand %p139, %p140
      %p142 = pneg %p141
      // Predicated region
      $region29: #{tpu_custom_call.1} parent=5 // pred_check
        _
      $region30: #{tpu_custom_call.1} parent=5 // pred_check_branch
        %144 = sbr.rel (%p141) target = $region32
      $region31: #{tpu_custom_call.1} parent=5 // pred_region
        %s145 = ssub.s32 %s12, 1
        %p146 = scmp.lt.s32.totalorder %s17, 1
        %s147 = scalar_select %p146, %s17, 1
        %s148 = smul.addr %s147, 128
        %s149 = smul.addr %s148, 8
        %s150 = scalar_lea.vmem %s0, %s149
        %p151 = pneg %p38
        %p152 = pneg %p35
        %p153 = pneg %p59
        %p154 = pneg %p56
        %p155 = pneg %p80
        %p156 = pneg %p77
        %p157 = pneg %p106
        %p158 = pneg %p103
        %s159 = sand.u32 %s93, 1
        %s160 = scalar_lea.sflag [#allocation3], %s159
        %s161 = sand.u32 %s93, 1
        %s162 = smul.addr %s161, 1024
        %s163 = scalar_lea.vmem [#allocation2], %s162
        %p164 = scmp.lt.s32.totalorder %s17, 1
        %s165 = scalar_select %p164, %s17, 1
        %s166 = smul.addr %s165, 128
        %s167 = smul.addr %s166, 8
        %s168 = scalar_lea.vmem %s0, %s167
        %v169 = vld [vmem:[%s168] sm:$0xff]
        %v170 = vld [vmem:[%s168 + $0x8] sm:$0xff]
        %v171 = vld [vmem:[%s168 + $0x10] sm:$0xff]
        %v172 = vld [vmem:[%s168 + $0x18] sm:$0xff]
        %v173 = vld [vmem:[%s168 + $0x20] sm:$0xff]
        %v174 = vld [vmem:[%s168 + $0x28] sm:$0xff]
        %v175 = vld [vmem:[%s168 + $0x30] sm:$0xff]
        %v176 = vld [vmem:[%s168 + $0x38] sm:$0xff]
        %v177 = vld [vmem:[%s168 + $0x40] sm:$0xff]
        %v178 = vld [vmem:[%s168 + $0x48] sm:$0xff]
        %v179 = vld [vmem:[%s168 + $0x50] sm:$0xff]
        %v180 = vld [vmem:[%s168 + $0x58] sm:$0xff]
        %v181 = vld [vmem:[%s168 + $0x60] sm:$0xff]
        %v182 = vld [vmem:[%s168 + $0x68] sm:$0xff]
        %v183 = vld [vmem:[%s168 + $0x70] sm:$0xff]
        %v184 = vld [vmem:[%s168 + $0x78] sm:$0xff]
        %v185 = vld [vmem:[%s168 + $0x80] sm:$0xff]
        %v186 = vld [vmem:[%s168 + $0x88] sm:$0xff]
        %v187 = vld [vmem:[%s168 + $0x90] sm:$0xff]
        %v188 = vld [vmem:[%s168 + $0x98] sm:$0xff]
        %v189 = vld [vmem:[%s168 + $0xa0] sm:$0xff]
        %v190 = vld [vmem:[%s168 + $0xa8] sm:$0xff]
        %v191 = vld [vmem:[%s168 + $0xb0] sm:$0xff]
        %v192 = vld [vmem:[%s168 + $0xb8] sm:$0xff]
        %v193 = vld [vmem:[%s168 + $0xc0] sm:$0xff]
        %v194 = vld [vmem:[%s168 + $0xc8] sm:$0xff]
        %v195 = vld [vmem:[%s168 + $0xd0] sm:$0xff]
        %v196 = vld [vmem:[%s168 + $0xd8] sm:$0xff]
        %v197 = vld [vmem:[%s168 + $0xe0] sm:$0xff]
        %v198 = vld [vmem:[%s168 + $0xe8] sm:$0xff]
        %v199 = vld [vmem:[%s168 + $0xf0] sm:$0xff]
        %v200 = vld [vmem:[%s168 + $0xf8] sm:$0xff]
        %v201 = vld [vmem:[%s168 + $0x100] sm:$0xff]
        %v202 = vld [vmem:[%s168 + $0x108] sm:$0xff]
        %v203 = vld [vmem:[%s168 + $0x110] sm:$0xff]
        %v204 = vld [vmem:[%s168 + $0x118] sm:$0xff]
        %v205 = vld [vmem:[%s168 + $0x120] sm:$0xff]
        %v206 = vld [vmem:[%s168 + $0x128] sm:$0xff]
        %v207 = vld [vmem:[%s168 + $0x130] sm:$0xff]
        %v208 = vld [vmem:[%s168 + $0x138] sm:$0xff]
        %v209 = vld [vmem:[%s168 + $0x140] sm:$0xff]
        %v210 = vld [vmem:[%s168 + $0x148] sm:$0xff]
        %v211 = vld [vmem:[%s168 + $0x150] sm:$0xff]
        %v212 = vld [vmem:[%s168 + $0x158] sm:$0xff]
        %v213 = vld [vmem:[%s168 + $0x160] sm:$0xff]
        %v214 = vld [vmem:[%s168 + $0x168] sm:$0xff]
        %v215 = vld [vmem:[%s168 + $0x170] sm:$0xff]
        %v216 = vld [vmem:[%s168 + $0x178] sm:$0xff]
        %v217 = vld [vmem:[%s168 + $0x180] sm:$0xff]
        %v218 = vld [vmem:[%s168 + $0x188] sm:$0xff]
        %v219 = vld [vmem:[%s168 + $0x190] sm:$0xff]
        %v220 = vld [vmem:[%s168 + $0x198] sm:$0xff]
        %v221 = vld [vmem:[%s168 + $0x1a0] sm:$0xff]
        %v222 = vld [vmem:[%s168 + $0x1a8] sm:$0xff]
        %v223 = vld [vmem:[%s168 + $0x1b0] sm:$0xff]
        %v224 = vld [vmem:[%s168 + $0x1b8] sm:$0xff]
        %v225 = vld [vmem:[%s168 + $0x1c0] sm:$0xff]
        %v226 = vld [vmem:[%s168 + $0x1c8] sm:$0xff]
        %v227 = vld [vmem:[%s168 + $0x1d0] sm:$0xff]
        %v228 = vld [vmem:[%s168 + $0x1d8] sm:$0xff]
        %v229 = vld [vmem:[%s168 + $0x1e0] sm:$0xff]
        %v230 = vld [vmem:[%s168 + $0x1e8] sm:$0xff]
        %v231 = vld [vmem:[%s168 + $0x1f0] sm:$0xff]
        %v232 = vld [vmem:[%s168 + $0x1f8] sm:$0xff]
        %v233 = vld [vmem:[%s1] sm:$0xff]
        %v234 = vld [vmem:[%s1 + $0x8] sm:$0xff]
        %v235 = vld [vmem:[%s1 + $0x10] sm:$0xff]
        %v236 = vld [vmem:[%s1 + $0x18] sm:$0x7]
        %v237 = vld [vmem:[%s2] sm:$0x1]
        %v239 = vlaneseq
        %v240 = vshrl.u32 %v239, 7
        %v241 = vsub.s32 0, %v240
        %v242 = vrot.slane %v237, %v241
        %vm244 = vcmask 220160
        %v246 = vsel %vm244, %v169, 0
        %v249 = vsel %vm244, %v170, 0
        %v252 = vsel %vm244, %v171, 0
        %v255 = vsel %vm244, %v172, 0
        %v258 = vsel %vm244, %v173, 0
        %v261 = vsel %vm244, %v174, 0
        %v264 = vsel %vm244, %v175, 0
        %v267 = vsel %vm244, %v176, 0
        %v270 = vsel %vm244, %v177, 0
        %v273 = vsel %vm244, %v178, 0
        %v276 = vsel %vm244, %v179, 0
        %v279 = vsel %vm244, %v180, 0
        %v282 = vsel %vm244, %v181, 0
        %v285 = vsel %vm244, %v182, 0
        %v288 = vsel %vm244, %v183, 0
        %v291 = vsel %vm244, %v184, 0
        %v294 = vsel %vm244, %v185, 0
        %v297 = vsel %vm244, %v186, 0
        %v300 = vsel %vm244, %v187, 0
        %v303 = vsel %vm244, %v188, 0
        %v306 = vsel %vm244, %v189, 0
        %v309 = vsel %vm244, %v190, 0
        %v312 = vsel %vm244, %v191, 0
        %v315 = vsel %vm244, %v192, 0
        %v318 = vsel %vm244, %v193, 0
        %v321 = vsel %vm244, %v194, 0
        %v324 = vsel %vm244, %v195, 0
        %v327 = vsel %vm244, %v196, 0
        %v330 = vsel %vm244, %v197, 0
        %v333 = vsel %vm244, %v198, 0
        %v336 = vsel %vm244, %v199, 0
        %v339 = vsel %vm244, %v200, 0
        %v342 = vsel %vm244, %v201, 0
        %v345 = vsel %vm244, %v202, 0
        %v348 = vsel %vm244, %v203, 0
        %v351 = vsel %vm244, %v204, 0
        %v354 = vsel %vm244, %v205, 0
        %v357 = vsel %vm244, %v206, 0
        %v360 = vsel %vm244, %v207, 0
        %v363 = vsel %vm244, %v208, 0
        %v366 = vsel %vm244, %v209, 0
        %v369 = vsel %vm244, %v210, 0
        %v372 = vsel %vm244, %v211, 0
        %v375 = vsel %vm244, %v212, 0
        %v378 = vsel %vm244, %v213, 0
        %v381 = vsel %vm244, %v214, 0
        %v384 = vsel %vm244, %v215, 0
        %v387 = vsel %vm244, %v216, 0
        %v390 = vsel %vm244, %v217, 0
        %v393 = vsel %vm244, %v218, 0
        %v396 = vsel %vm244, %v219, 0
        %v399 = vsel %vm244, %v220, 0
        %v402 = vsel %vm244, %v221, 0
        %v405 = vsel %vm244, %v222, 0
        %v408 = vsel %vm244, %v223, 0
        %v411 = vsel %vm244, %v224, 0
        %v414 = vsel %vm244, %v225, 0
        %v417 = vsel %vm244, %v226, 0
        %v420 = vsel %vm244, %v227, 0
        %v423 = vsel %vm244, %v228, 0
        %v426 = vsel %vm244, %v229, 0
        %v429 = vsel %vm244, %v230, 0
        %v432 = vsel %vm244, %v231, 0
        %v435 = vsel %vm244, %v232, 0
        %vm437 = vcmask 1042432
        %v439 = vsel %vm437, %v236, 0
        %441 = vmatprep.subr.mxu0 0.0
        %442 = vmatpush1.msra.mxu0 %v233
        %443 = vmatprep.subr.mxu0 0.0
        %444 = vmatpush1.msra.mxu0 %v234
        %445 = vmatprep.subr.mxu0 0.0
        %446 = vmatpush1.msra.mxu0 %v235
        %447 = vmatprep.subr.mxu0 0.0
        %448 = vmatpush1.msra.mxu0 %v439
        %449 = vmatprep.subr.mxu0 0.0
        %450 = vmatpush1.msra.mxu0 0.0
        %451 = vmatprep.subr.mxu0 0.0
        %452 = vmatpush1.msra.mxu0 0.0
        %453 = vmatprep.subr.mxu0 0.0
        %454 = vmatpush1.msra.mxu0 0.0
        %455 = vmatprep.subr.mxu0 0.0
        %456 = vmatpush1.msra.mxu0 0.0
        %457 = vmatprep.subr.mxu0 0.0
        %458 = vmatpush1.msra.mxu0 0.0
        %459 = vmatprep.subr.mxu0 0.0
        %460 = vmatpush1.msra.mxu0 0.0
        %461 = vmatprep.subr.mxu0 0.0
        %462 = vmatpush1.msra.mxu0 0.0
        %463 = vmatprep.subr.mxu0 0.0
        %464 = vmatpush1.msra.mxu0 0.0
        %465 = vmatprep.subr.mxu0 0.0
        %466 = vmatpush1.msra.mxu0 0.0
        %467 = vmatprep.subr.mxu0 0.0
        %468 = vmatpush1.msra.mxu0 0.0
        %469 = vmatprep.subr.mxu0 0.0
        %470 = vmatpush1.msra.mxu0 0.0
        %471 = vmatprep.subr.mxu0 0.0
        %472 = vmatpush1.msra.mxu0 0.0
        %473 = vmatprep.subr.mxu0 0.0
        %474 = vmatpush1.msra.mxu0 0.0
        %475 = vmatprep.subr.mxu0 0.0
        %476 = vmatpush1.msra.mxu0 0.0
        %477 = vmatprep.subr.mxu0 0.0
        %478 = vmatpush1.msra.mxu0 0.0
        %479 = vmatprep.subr.mxu0 0.0
        %480 = vmatpush1.msra.mxu0 0.0
        %481 = vmatprep.subr.mxu0 0.0
        %482 = vmatpush1.msra.mxu0 0.0
        %483 = vmatprep.subr.mxu0 0.0
        %484 = vmatpush1.msra.mxu0 0.0
        %485 = vmatprep.subr.mxu0 0.0
        %486 = vmatpush1.msra.mxu0 0.0
        %487 = vmatprep.subr.mxu0 0.0
        %488 = vmatpush1.msra.mxu0 0.0
        %489 = vmatprep.subr.mxu0 0.0
        %490 = vmatpush1.msra.mxu0 0.0
        %491 = vmatprep.subr.mxu0 0.0
        %492 = vmatpush1.msra.mxu0 0.0
        %493 = vmatprep.subr.mxu0 0.0
        %494 = vmatpush1.msra.mxu0 0.0
        %495 = vmatprep.subr.mxu0 0.0
        %496 = vmatpush1.msra.mxu0 0.0
        %497 = vmatprep.subr.mxu0 0.0
        %498 = vmatpush1.msra.mxu0 0.0
        %499 = vmatprep.subr.mxu0 0.0
        %500 = vmatpush1.msra.mxu0 0.0
        %501 = vmatprep.subr.mxu0 0.0
        %502 = vmatpush1.msra.mxu0 0.0
        %503 = vmatprep.subr.mxu0 0.0
        %504 = vmatpush1.msra.mxu0 0.0
        %505 = vmatprep.mubr.f32.mxu0 0.0
        %506 = vmatmul.mubr.f32.gmra.mrb[0].mxu0 %v246
        %v507 = vpop.f32.mrb[0].mxu0
        %v508 = vadd.f32 %v242, %v507
        %v509 = vpop.f32.mrb[0].mxu0
        %510 = vmatprep.mubr.f32.mxu0 0.0
        %511 = vmatmul.mubr.f32.gmra.mrb[0].mxu0 %v249
        %v512 = vpop.f32.mrb[0].mxu0
        %v513 = vadd.f32 %v242, %v512
        %v514 = vpop.f32.mrb[0].mxu0
        %515 = vmatprep.mubr.f32.mxu0 0.0
        %516 = vmatmul.mubr.f32.gmra.mrb[0].mxu0 %v252
        %v517 = vpop.f32.mrb[0].mxu0
        %v518 = vadd.f32 %v242, %v517
        %v519 = vpop.f32.mrb[0].mxu0
        %520 = vmatprep.mubr.f32.mxu0 0.0
        %521 = vmatmul.mubr.f32.gmra.mrb[0].mxu0 %v255
        %v522 = vpop.f32.mrb[0].mxu0
        %v523 = vadd.f32 %v242, %v522
        %v524 = vpop.f32.mrb[0].mxu0
        %525 = vmatprep.mubr.f32.mxu0 0.0
        %526 = vmatmul.mubr.f32.gmra.mrb[0].mxu0 %v258
        %v527 = vpop.f32.mrb[0].mxu0
        %v528 = vadd.f32 %v242, %v527
        %v529 = vpop.f32.mrb[0].mxu0
        %530 = vmatprep.mubr.f32.mxu0 0.0
        %531 = vmatmul.mubr.f32.gmra.mrb[0].mxu0 %v261
        %v532 = vpop.f32.mrb[0].mxu0
        %v533 = vadd.f32 %v242, %v532
        %v534 = vpop.f32.mrb[0].mxu0
        %535 = vmatprep.mubr.f32.mxu0 0.0
        %536 = vmatmul.mubr.f32.gmra.mrb[0].mxu0 %v264
        %v537 = vpop.f32.mrb[0].mxu0
        %v538 = vadd.f32 %v242, %v537
        %v539 = vpop.f32.mrb[0].mxu0
        %540 = vmatprep.mubr.f32.mxu0 0.0
        %541 = vmatmul.mubr.f32.gmra.mrb[0].mxu0 %v267
        %v542 = vpop.f32.mrb[0].mxu0
        %v543 = vadd.f32 %v242, %v542
        %v544 = vpop.f32.mrb[0].mxu0
        %545 = vmatprep.mubr.f32.mxu0 0.0
        %546 = vmatmul.mubr.f32.gmra.mrb[0].mxu0 %v270
        %v547 = vpop.f32.mrb[0].mxu0
        %v548 = vadd.f32 %v242, %v547
        %v549 = vpop.f32.mrb[0].mxu0
        %550 = vmatprep.mubr.f32.mxu0 0.0
        %551 = vmatmul.mubr.f32.gmra.mrb[0].mxu0 %v273
        %v552 = vpop.f32.mrb[0].mxu0
        %v553 = vadd.f32 %v242, %v552
        %v554 = vpop.f32.mrb[0].mxu0
        %555 = vmatprep.mubr.f32.mxu0 0.0
        %556 = vmatmul.mubr.f32.gmra.mrb[0].mxu0 %v276
        %v557 = vpop.f32.mrb[0].mxu0
        %v558 = vadd.f32 %v242, %v557
        %v559 = vpop.f32.mrb[0].mxu0
        %560 = vmatprep.mubr.f32.mxu0 0.0
        %561 = vmatmul.mubr.f32.gmra.mrb[0].mxu0 %v279
        %v562 = vpop.f32.mrb[0].mxu0
        %v563 = vadd.f32 %v242, %v562
        %v564 = vpop.f32.mrb[0].mxu0
        %565 = vmatprep.mubr.f32.mxu0 0.0
        %566 = vmatmul.mubr.f32.gmra.mrb[0].mxu0 %v282
        %v567 = vpop.f32.mrb[0].mxu0
        %v568 = vadd.f32 %v242, %v567
        %v569 = vpop.f32.mrb[0].mxu0
        %570 = vmatprep.mubr.f32.mxu0 0.0
        %571 = vmatmul.mubr.f32.gmra.mrb[0].mxu0 %v285
        %v572 = vpop.f32.mrb[0].mxu0
        %v573 = vadd.f32 %v242, %v572
        %v574 = vpop.f32.mrb[0].mxu0
        %575 = vmatprep.mubr.f32.mxu0 0.0
        %576 = vmatmul.mubr.f32.gmra.mrb[0].mxu0 %v288
        %v577 = vpop.f32.mrb[0].mxu0
        %v578 = vadd.f32 %v242, %v577
        %v579 = vpop.f32.mrb[0].mxu0
        %580 = vmatprep.mubr.f32.mxu0 0.0
        %581 = vmatmul.mubr.f32.gmra.mrb[0].mxu0 %v291
        %v582 = vpop.f32.mrb[0].mxu0
        %v583 = vadd.f32 %v242, %v582
        %v584 = vpop.f32.mrb[0].mxu0
        %585 = vmatprep.mubr.f32.mxu0 0.0
        %586 = vmatmul.mubr.f32.gmra.mrb[0].mxu0 %v294
        %v587 = vpop.f32.mrb[0].mxu0
        %v588 = vadd.f32 %v242, %v587
        %v589 = vpop.f32.mrb[0].mxu0
        %590 = vmatprep.mubr.f32.mxu0 0.0
        %591 = vmatmul.mubr.f32.gmra.mrb[0].mxu0 %v297
        %v592 = vpop.f32.mrb[0].mxu0
        %v593 = vadd.f32 %v242, %v592
        %v594 = vpop.f32.mrb[0].mxu0
        %595 = vmatprep.mubr.f32.mxu0 0.0
        %596 = vmatmul.mubr.f32.gmra.mrb[0].mxu0 %v300
        %v597 = vpop.f32.mrb[0].mxu0
        %v598 = vadd.f32 %v242, %v597
        %v599 = vpop.f32.mrb[0].mxu0
        %600 = vmatprep.mubr.f32.mxu0 0.0
        %601 = vmatmul.mubr.f32.gmra.mrb[0].mxu0 %v303
        %v602 = vpop.f32.mrb[0].mxu0
        %v603 = vadd.f32 %v242, %v602
        %v604 = vpop.f32.mrb[0].mxu0
        %605 = vmatprep.mubr.f32.mxu0 0.0
        %606 = vmatmul.mubr.f32.gmra.mrb[0].mxu0 %v306
        %v607 = vpop.f32.mrb[0].mxu0
        %v608 = vadd.f32 %v242, %v607
        %v609 = vpop.f32.mrb[0].mxu0
        %610 = vmatprep.mubr.f32.mxu0 0.0
        %611 = vmatmul.mubr.f32.gmra.mrb[0].mxu0 %v309
        %v612 = vpop.f32.mrb[0].mxu0
        %v613 = vadd.f32 %v242, %v612
        %v614 = vpop.f32.mrb[0].mxu0
        %615 = vmatprep.mubr.f32.mxu0 0.0
        %616 = vmatmul.mubr.f32.gmra.mrb[0].mxu0 %v312
        %v617 = vpop.f32.mrb[0].mxu0
        %v618 = vadd.f32 %v242, %v617
        %v619 = vpop.f32.mrb[0].mxu0
        %620 = vmatprep.mubr.f32.mxu0 0.0
        %621 = vmatmul.mubr.f32.gmra.mrb[0].mxu0 %v315
        %v622 = vpop.f32.mrb[0].mxu0
        %v623 = vadd.f32 %v242, %v622
        %v624 = vpop.f32.mrb[0].mxu0
        %625 = vmatprep.mubr.f32.mxu0 0.0
        %626 = vmatmul.mubr.f32.gmra.mrb[0].mxu0 %v318
        %v627 = vpop.f32.mrb[0].mxu0
        %v628 = vadd.f32 %v242, %v627
        %v629 = vpop.f32.mrb[0].mxu0
        %630 = vmatprep.mubr.f32.mxu0 0.0
        %631 = vmatmul.mubr.f32.gmra.mrb[0].mxu0 %v321
        %v632 = vpop.f32.mrb[0].mxu0
        %v633 = vadd.f32 %v242, %v632
        %v634 = vpop.f32.mrb[0].mxu0
        %635 = vmatprep.mubr.f32.mxu0 0.0
        %636 = vmatmul.mubr.f32.gmra.mrb[0].mxu0 %v324
        %v637 = vpop.f32.mrb[0].mxu0
        %v638 = vadd.f32 %v242, %v637
        %v639 = vpop.f32.mrb[0].mxu0
        %640 = vmatprep.mubr.f32.mxu0 0.0
        %641 = vmatmul.mubr.f32.gmra.mrb[0].mxu0 %v327
        %v642 = vpop.f32.mrb[0].mxu0
        %v643 = vadd.f32 %v242, %v642
        %v644 = vpop.f32.mrb[0].mxu0
        %645 = vmatprep.mubr.f32.mxu0 0.0
        %646 = vmatmul.mubr.f32.gmra.mrb[0].mxu0 %v330
        %v647 = vpop.f32.mrb[0].mxu0
        %v648 = vadd.f32 %v242, %v647
        %v649 = vpop.f32.mrb[0].mxu0
        %650 = vmatprep.mubr.f32.mxu0 0.0
        %651 = vmatmul.mubr.f32.gmra.mrb[0].mxu0 %v333
        %v652 = vpop.f32.mrb[0].mxu0
        %v653 = vadd.f32 %v242, %v652
        %v654 = vpop.f32.mrb[0].mxu0
        %655 = vmatprep.mubr.f32.mxu0 0.0
        %656 = vmatmul.mubr.f32.gmra.mrb[0].mxu0 %v336
        %v657 = vpop.f32.mrb[0].mxu0
        %v658 = vadd.f32 %v242, %v657
        %v659 = vpop.f32.mrb[0].mxu0
        %660 = vmatprep.mubr.f32.mxu0 0.0
        %661 = vmatmul.mubr.f32.gmra.mrb[0].mxu0 %v339
        %v662 = vpop.f32.mrb[0].mxu0
        %v663 = vadd.f32 %v242, %v662
        %v664 = vpop.f32.mrb[0].mxu0
        %665 = vmatprep.mubr.f32.mxu0 0.0
        %666 = vmatmul.mubr.f32.gmra.mrb[0].mxu0 %v342
        %v667 = vpop.f32.mrb[0].mxu0
        %v668 = vadd.f32 %v242, %v667
        %v669 = vpop.f32.mrb[0].mxu0
        %670 = vmatprep.mubr.f32.mxu0 0.0
        %671 = vmatmul.mubr.f32.gmra.mrb[0].mxu0 %v345
        %v672 = vpop.f32.mrb[0].mxu0
        %v673 = vadd.f32 %v242, %v672
        %v674 = vpop.f32.mrb[0].mxu0
        %675 = vmatprep.mubr.f32.mxu0 0.0
        %676 = vmatmul.mubr.f32.gmra.mrb[0].mxu0 %v348
        %v677 = vpop.f32.mrb[0].mxu0
        %v678 = vadd.f32 %v242, %v677
        %v679 = vpop.f32.mrb[0].mxu0
        %680 = vmatprep.mubr.f32.mxu0 0.0
        %681 = vmatmul.mubr.f32.gmra.mrb[0].mxu0 %v351
        %v682 = vpop.f32.mrb[0].mxu0
        %v683 = vadd.f32 %v242, %v682
        %v684 = vpop.f32.mrb[0].mxu0
        %685 = vmatprep.mubr.f32.mxu0 0.0
        %686 = vmatmul.mubr.f32.gmra.mrb[0].mxu0 %v354
        %v687 = vpop.f32.mrb[0].mxu0
        %v688 = vadd.f32 %v242, %v687
        %v689 = vpop.f32.mrb[0].mxu0
        %690 = vmatprep.mubr.f32.mxu0 0.0
        %691 = vmatmul.mubr.f32.gmra.mrb[0].mxu0 %v357
        %v692 = vpop.f32.mrb[0].mxu0
        %v693 = vadd.f32 %v242, %v692
        %v694 = vpop.f32.mrb[0].mxu0
        %695 = vmatprep.mubr.f32.mxu0 0.0
        %696 = vmatmul.mubr.f32.gmra.mrb[0].mxu0 %v360
        %v697 = vpop.f32.mrb[0].mxu0
        %v698 = vadd.f32 %v242, %v697
        %v699 = vpop.f32.mrb[0].mxu0
        %700 = vmatprep.mubr.f32.mxu0 0.0
        %701 = vmatmul.mubr.f32.gmra.mrb[0].mxu0 %v363
        %v702 = vpop.f32.mrb[0].mxu0
        %v703 = vadd.f32 %v242, %v702
        %v704 = vpop.f32.mrb[0].mxu0
        %705 = vmatprep.mubr.f32.mxu0 0.0
        %706 = vmatmul.mubr.f32.gmra.mrb[0].mxu0 %v366
        %v707 = vpop.f32.mrb[0].mxu0
        %v708 = vadd.f32 %v242, %v707
        %v709 = vpop.f32.mrb[0].mxu0
        %710 = vmatprep.mubr.f32.mxu0 0.0
        %711 = vmatmul.mubr.f32.gmra.mrb[0].mxu0 %v369
        %v712 = vpop.f32.mrb[0].mxu0
        %v713 = vadd.f32 %v242, %v712
        %v714 = vpop.f32.mrb[0].mxu0
        %715 = vmatprep.mubr.f32.mxu0 0.0
        %716 = vmatmul.mubr.f32.gmra.mrb[0].mxu0 %v372
        %v717 = vpop.f32.mrb[0].mxu0
        %v718 = vadd.f32 %v242, %v717
        %v719 = vpop.f32.mrb[0].mxu0
        %720 = vmatprep.mubr.f32.mxu0 0.0
        %721 = vmatmul.mubr.f32.gmra.mrb[0].mxu0 %v375
        %v722 = vpop.f32.mrb[0].mxu0
        %v723 = vadd.f32 %v242, %v722
        %v724 = vpop.f32.mrb[0].mxu0
        %725 = vmatprep.mubr.f32.mxu0 0.0
        %726 = vmatmul.mubr.f32.gmra.mrb[0].mxu0 %v378
        %v727 = vpop.f32.mrb[0].mxu0
        %v728 = vadd.f32 %v242, %v727
        %v729 = vpop.f32.mrb[0].mxu0
        %730 = vmatprep.mubr.f32.mxu0 0.0
        %731 = vmatmul.mubr.f32.gmra.mrb[0].mxu0 %v381
        %v732 = vpop.f32.mrb[0].mxu0
        %v733 = vadd.f32 %v242, %v732
        %v734 = vpop.f32.mrb[0].mxu0
        %735 = vmatprep.mubr.f32.mxu0 0.0
        %736 = vmatmul.mubr.f32.gmra.mrb[0].mxu0 %v384
        %v737 = vpop.f32.mrb[0].mxu0
        %v738 = vadd.f32 %v242, %v737
        %v739 = vpop.f32.mrb[0].mxu0
        %740 = vmatprep.mubr.f32.mxu0 0.0
        %741 = vmatmul.mubr.f32.gmra.mrb[0].mxu0 %v387
        %v742 = vpop.f32.mrb[0].mxu0
        %v743 = vadd.f32 %v242, %v742
        %v744 = vpop.f32.mrb[0].mxu0
        %745 = vmatprep.mubr.f32.mxu0 0.0
        %746 = vmatmul.mubr.f32.gmra.mrb[0].mxu0 %v390
        %v747 = vpop.f32.mrb[0].mxu0
        %v748 = vadd.f32 %v242, %v747
        %v749 = vpop.f32.mrb[0].mxu0
        %750 = vmatprep.mubr.f32.mxu0 0.0
        %751 = vmatmul.mubr.f32.gmra.mrb[0].mxu0 %v393
        %v752 = vpop.f32.mrb[0].mxu0
        %v753 = vadd.f32 %v242, %v752
        %v754 = vpop.f32.mrb[0].mxu0
        %755 = vmatprep.mubr.f32.mxu0 0.0
        %756 = vmatmul.mubr.f32.gmra.mrb[0].mxu0 %v396
        %v757 = vpop.f32.mrb[0].mxu0
        %v758 = vadd.f32 %v242, %v757
        %v759 = vpop.f32.mrb[0].mxu0
        %760 = vmatprep.mubr.f32.mxu0 0.0
        %761 = vmatmul.mubr.f32.gmra.mrb[0].mxu0 %v399
        %v762 = vpop.f32.mrb[0].mxu0
        %v763 = vadd.f32 %v242, %v762
        %v764 = vpop.f32.mrb[0].mxu0
        %765 = vmatprep.mubr.f32.mxu0 0.0
        %766 = vmatmul.mubr.f32.gmra.mrb[0].mxu0 %v402
        %v767 = vpop.f32.mrb[0].mxu0
        %v768 = vadd.f32 %v242, %v767
        %v769 = vpop.f32.mrb[0].mxu0
        %770 = vmatprep.mubr.f32.mxu0 0.0
        %771 = vmatmul.mubr.f32.gmra.mrb[0].mxu0 %v405
        %v772 = vpop.f32.mrb[0].mxu0
        %v773 = vadd.f32 %v242, %v772
        %v774 = vpop.f32.mrb[0].mxu0
        %775 = vmatprep.mubr.f32.mxu0 0.0
        %776 = vmatmul.mubr.f32.gmra.mrb[0].mxu0 %v408
        %v777 = vpop.f32.mrb[0].mxu0
        %v778 = vadd.f32 %v242, %v777
        %v779 = vpop.f32.mrb[0].mxu0
        %780 = vmatprep.mubr.f32.mxu0 0.0
        %781 = vmatmul.mubr.f32.gmra.mrb[0].mxu0 %v411
        %v782 = vpop.f32.mrb[0].mxu0
        %v783 = vadd.f32 %v242, %v782
        %v784 = vpop.f32.mrb[0].mxu0
        %785 = vmatprep.mubr.f32.mxu0 0.0
        %786 = vmatmul.mubr.f32.gmra.mrb[0].mxu0 %v414
        %v787 = vpop.f32.mrb[0].mxu0
        %v788 = vadd.f32 %v242, %v787
        %v789 = vpop.f32.mrb[0].mxu0
        %790 = vmatprep.mubr.f32.mxu0 0.0
        %791 = vmatmul.mubr.f32.gmra.mrb[0].mxu0 %v417
        %v792 = vpop.f32.mrb[0].mxu0
        %v793 = vadd.f32 %v242, %v792
        %v794 = vpop.f32.mrb[0].mxu0
        %795 = vmatprep.mubr.f32.mxu0 0.0
        %796 = vmatmul.mubr.f32.gmra.mrb[0].mxu0 %v420
        %v797 = vpop.f32.mrb[0].mxu0
        %v798 = vadd.f32 %v242, %v797
        %v799 = vpop.f32.mrb[0].mxu0
        %800 = vmatprep.mubr.f32.mxu0 0.0
        %801 = vmatmul.mubr.f32.gmra.mrb[0].mxu0 %v423
        %v802 = vpop.f32.mrb[0].mxu0
        %v803 = vadd.f32 %v242, %v802
        %v804 = vpop.f32.mrb[0].mxu0
        %805 = vmatprep.mubr.f32.mxu0 0.0
        %806 = vmatmul.mubr.f32.gmra.mrb[0].mxu0 %v426
        %v807 = vpop.f32.mrb[0].mxu0
        %v808 = vadd.f32 %v242, %v807
        %v809 = vpop.f32.mrb[0].mxu0
        %810 = vmatprep.mubr.f32.mxu0 0.0
        %811 = vmatmul.mubr.f32.gmra.mrb[0].mxu0 %v429
        %v812 = vpop.f32.mrb[0].mxu0
        %v813 = vadd.f32 %v242, %v812
        %v814 = vpop.f32.mrb[0].mxu0
        %815 = vmatprep.mubr.f32.mxu0 0.0
        %816 = vmatmul.mubr.f32.gmra.mrb[0].mxu0 %v432
        %v817 = vpop.f32.mrb[0].mxu0
        %v818 = vadd.f32 %v242, %v817
        %v819 = vpop.f32.mrb[0].mxu0
        %820 = vmatprep.mubr.f32.mxu0 0.0
        %821 = vmatmul.mubr.f32.gmra.mrb[0].mxu0 %v435
        %v822 = vpop.f32.mrb[0].mxu0
        %v823 = vadd.f32 %v242, %v822
        %v824 = vpop.f32.mrb[0].mxu0
        %825 = vdwg.mxu0
        %v826 = vmax.f32 %v508, 0.0
        %v827 = vmax.f32 %v513, 0.0
        %v828 = vmax.f32 %v518, 0.0
        %v829 = vmax.f32 %v523, 0.0
        %v830 = vmax.f32 %v528, 0.0
        %v831 = vmax.f32 %v533, 0.0
        %v832 = vmax.f32 %v538, 0.0
        %v833 = vmax.f32 %v543, 0.0
        %v834 = vmax.f32 %v548, 0.0
        %v835 = vmax.f32 %v553, 0.0
        %v836 = vmax.f32 %v558, 0.0
        %v837 = vmax.f32 %v563, 0.0
        %v838 = vmax.f32 %v568, 0.0
        %v839 = vmax.f32 %v573, 0.0
        %v840 = vmax.f32 %v578, 0.0
        %v841 = vmax.f32 %v583, 0.0
        %v842 = vmax.f32 %v588, 0.0
        %v843 = vmax.f32 %v593, 0.0
        %v844 = vmax.f32 %v598, 0.0
        %v845 = vmax.f32 %v603, 0.0
        %v846 = vmax.f32 %v608, 0.0
        %v847 = vmax.f32 %v613, 0.0
        %v848 = vmax.f32 %v618, 0.0
        %v849 = vmax.f32 %v623, 0.0
        %v850 = vmax.f32 %v628, 0.0
        %v851 = vmax.f32 %v633, 0.0
        %v852 = vmax.f32 %v638, 0.0
        %v853 = vmax.f32 %v643, 0.0
        %v854 = vmax.f32 %v648, 0.0
        %v855 = vmax.f32 %v653, 0.0
        %v856 = vmax.f32 %v658, 0.0
        %v857 = vmax.f32 %v663, 0.0
        %v858 = vmax.f32 %v668, 0.0
        %v859 = vmax.f32 %v673, 0.0
        %v860 = vmax.f32 %v678, 0.0
        %v861 = vmax.f32 %v683, 0.0
        %v862 = vmax.f32 %v688, 0.0
        %v863 = vmax.f32 %v693, 0.0
        %v864 = vmax.f32 %v698, 0.0
        %v865 = vmax.f32 %v703, 0.0
        %v866 = vmax.f32 %v708, 0.0
        %v867 = vmax.f32 %v713, 0.0
        %v868 = vmax.f32 %v718, 0.0
        %v869 = vmax.f32 %v723, 0.0
        %v870 = vmax.f32 %v728, 0.0
        %v871 = vmax.f32 %v733, 0.0
        %v872 = vmax.f32 %v738, 0.0
        %v873 = vmax.f32 %v743, 0.0
        %v874 = vmax.f32 %v748, 0.0
        %v875 = vmax.f32 %v753, 0.0
        %v876 = vmax.f32 %v758, 0.0
        %v877 = vmax.f32 %v763, 0.0
        %v878 = vmax.f32 %v768, 0.0
        %v879 = vmax.f32 %v773, 0.0
        %v880 = vmax.f32 %v778, 0.0
        %v881 = vmax.f32 %v783, 0.0
        %v882 = vmax.f32 %v788, 0.0
        %v883 = vmax.f32 %v793, 0.0
        %v884 = vmax.f32 %v798, 0.0
        %v885 = vmax.f32 %v803, 0.0
        %v886 = vmax.f32 %v808, 0.0
        %v887 = vmax.f32 %v813, 0.0
        %v888 = vmax.f32 %v818, 0.0
        %v889 = vmax.f32 %v823, 0.0
        %vm890 = vcmask 523264
        %891 = vst.msk [vmem:[%s163] sm:$0xff] %vm890, %v826
        %892 = vst.msk [vmem:[%s163 + $0x8] sm:$0xff] %vm890, %v827
        %893 = vst.msk [vmem:[%s163 + $0x10] sm:$0xff] %vm890, %v828
        %894 = vst.msk [vmem:[%s163 + $0x18] sm:$0xff] %vm890, %v829
        %895 = vst.msk [vmem:[%s163 + $0x20] sm:$0xff] %vm890, %v830
        %896 = vst.msk [vmem:[%s163 + $0x28] sm:$0xff] %vm890, %v831
        %897 = vst.msk [vmem:[%s163 + $0x30] sm:$0xff] %vm890, %v832
        %898 = vst.msk [vmem:[%s163 + $0x38] sm:$0xff] %vm890, %v833
        %899 = vst.msk [vmem:[%s163 + $0x40] sm:$0xff] %vm890, %v834
        %900 = vst.msk [vmem:[%s163 + $0x48] sm:$0xff] %vm890, %v835
        %901 = vst.msk [vmem:[%s163 + $0x50] sm:$0xff] %vm890, %v836
        %902 = vst.msk [vmem:[%s163 + $0x58] sm:$0xff] %vm890, %v837
        %903 = vst.msk [vmem:[%s163 + $0x60] sm:$0xff] %vm890, %v838
        %904 = vst.msk [vmem:[%s163 + $0x68] sm:$0xff] %vm890, %v839
        %905 = vst.msk [vmem:[%s163 + $0x70] sm:$0xff] %vm890, %v840
        %906 = vst.msk [vmem:[%s163 + $0x78] sm:$0xff] %vm890, %v841
        %907 = vst.msk [vmem:[%s163 + $0x80] sm:$0xff] %vm890, %v842
        %908 = vst.msk [vmem:[%s163 + $0x88] sm:$0xff] %vm890, %v843
        %909 = vst.msk [vmem:[%s163 + $0x90] sm:$0xff] %vm890, %v844
        %910 = vst.msk [vmem:[%s163 + $0x98] sm:$0xff] %vm890, %v845
        %911 = vst.msk [vmem:[%s163 + $0xa0] sm:$0xff] %vm890, %v846
        %912 = vst.msk [vmem:[%s163 + $0xa8] sm:$0xff] %vm890, %v847
        %913 = vst.msk [vmem:[%s163 + $0xb0] sm:$0xff] %vm890, %v848
        %914 = vst.msk [vmem:[%s163 + $0xb8] sm:$0xff] %vm890, %v849
        %915 = vst.msk [vmem:[%s163 + $0xc0] sm:$0xff] %vm890, %v850
        %916 = vst.msk [vmem:[%s163 + $0xc8] sm:$0xff] %vm890, %v851
        %917 = vst.msk [vmem:[%s163 + $0xd0] sm:$0xff] %vm890, %v852
        %918 = vst.msk [vmem:[%s163 + $0xd8] sm:$0xff] %vm890, %v853
        %919 = vst.msk [vmem:[%s163 + $0xe0] sm:$0xff] %vm890, %v854
        %920 = vst.msk [vmem:[%s163 + $0xe8] sm:$0xff] %vm890, %v855
        %921 = vst.msk [vmem:[%s163 + $0xf0] sm:$0xff] %vm890, %v856
        %922 = vst.msk [vmem:[%s163 + $0xf8] sm:$0xff] %vm890, %v857
        %923 = vst.msk [vmem:[%s163 + $0x100] sm:$0xff] %vm890, %v858
        %924 = vst.msk [vmem:[%s163 + $0x108] sm:$0xff] %vm890, %v859
        %925 = vst.msk [vmem:[%s163 + $0x110] sm:$0xff] %vm890, %v860
        %926 = vst.msk [vmem:[%s163 + $0x118] sm:$0xff] %vm890, %v861
        %927 = vst.msk [vmem:[%s163 + $0x120] sm:$0xff] %vm890, %v862
        %928 = vst.msk [vmem:[%s163 + $0x128] sm:$0xff] %vm890, %v863
        %929 = vst.msk [vmem:[%s163 + $0x130] sm:$0xff] %vm890, %v864
        %930 = vst.msk [vmem:[%s163 + $0x138] sm:$0xff] %vm890, %v865
        %931 = vst.msk [vmem:[%s163 + $0x140] sm:$0xff] %vm890, %v866
        %932 = vst.msk [vmem:[%s163 + $0x148] sm:$0xff] %vm890, %v867
        %933 = vst.msk [vmem:[%s163 + $0x150] sm:$0xff] %vm890, %v868
        %934 = vst.msk [vmem:[%s163 + $0x158] sm:$0xff] %vm890, %v869
        %935 = vst.msk [vmem:[%s163 + $0x160] sm:$0xff] %vm890, %v870
        %936 = vst.msk [vmem:[%s163 + $0x168] sm:$0xff] %vm890, %v871
        %937 = vst.msk [vmem:[%s163 + $0x170] sm:$0xff] %vm890, %v872
        %938 = vst.msk [vmem:[%s163 + $0x178] sm:$0xff] %vm890, %v873
        %939 = vst.msk [vmem:[%s163 + $0x180] sm:$0xff] %vm890, %v874
        %940 = vst.msk [vmem:[%s163 + $0x188] sm:$0xff] %vm890, %v875
        %941 = vst.msk [vmem:[%s163 + $0x190] sm:$0xff] %vm890, %v876
        %942 = vst.msk [vmem:[%s163 + $0x198] sm:$0xff] %vm890, %v877
        %943 = vst.msk [vmem:[%s163 + $0x1a0] sm:$0xff] %vm890, %v878
        %944 = vst.msk [vmem:[%s163 + $0x1a8] sm:$0xff] %vm890, %v879
        %945 = vst.msk [vmem:[%s163 + $0x1b0] sm:$0xff] %vm890, %v880
        %946 = vst.msk [vmem:[%s163 + $0x1b8] sm:$0xff] %vm890, %v881
        %947 = vst.msk [vmem:[%s163 + $0x1c0] sm:$0xff] %vm890, %v882
        %948 = vst.msk [vmem:[%s163 + $0x1c8] sm:$0xff] %vm890, %v883
        %949 = vst.msk [vmem:[%s163 + $0x1d0] sm:$0xff] %vm890, %v884
        %950 = vst.msk [vmem:[%s163 + $0x1d8] sm:$0xff] %vm890, %v885
        %951 = vst.msk [vmem:[%s163 + $0x1e0] sm:$0xff] %vm890, %v886
        %952 = vst.msk [vmem:[%s163 + $0x1e8] sm:$0xff] %vm890, %v887
        %953 = vst.msk [vmem:[%s163 + $0x1f0] sm:$0xff] %vm890, %v888
        %954 = vst.msk [vmem:[%s163 + $0x1f8] sm:$0xff] %vm890, %v889
        %s955 = scalar_lea.vmem %s168, 512
        %v956 = vld [vmem:[%s955] sm:$0xff]
        %v957 = vld [vmem:[%s955 + $0x8] sm:$0xff]
        %v958 = vld [vmem:[%s955 + $0x10] sm:$0xff]
        %v959 = vld [vmem:[%s955 + $0x18] sm:$0xff]
        %v960 = vld [vmem:[%s955 + $0x20] sm:$0xff]
        %v961 = vld [vmem:[%s955 + $0x28] sm:$0xff]
        %v962 = vld [vmem:[%s955 + $0x30] sm:$0xff]
        %v963 = vld [vmem:[%s955 + $0x38] sm:$0xff]
        %v964 = vld [vmem:[%s955 + $0x40] sm:$0xff]
        %v965 = vld [vmem:[%s955 + $0x48] sm:$0xff]
        %v966 = vld [vmem:[%s955 + $0x50] sm:$0xff]
        %v967 = vld [vmem:[%s955 + $0x58] sm:$0xff]
        %v968 = vld [vmem:[%s955 + $0x60] sm:$0xff]
        %v969 = vld [vmem:[%s955 + $0x68] sm:$0xff]
        %v970 = vld [vmem:[%s955 + $0x70] sm:$0xff]
        %v971 = vld [vmem:[%s955 + $0x78] sm:$0xff]
        %v972 = vld [vmem:[%s955 + $0x80] sm:$0xff]
        %v973 = vld [vmem:[%s955 + $0x88] sm:$0xff]
        %v974 = vld [vmem:[%s955 + $0x90] sm:$0xff]
        %v975 = vld [vmem:[%s955 + $0x98] sm:$0xff]
        %v976 = vld [vmem:[%s955 + $0xa0] sm:$0xff]
        %v977 = vld [vmem:[%s955 + $0xa8] sm:$0xff]
        %v978 = vld [vmem:[%s955 + $0xb0] sm:$0xff]
        %v979 = vld [vmem:[%s955 + $0xb8] sm:$0xff]
        %v980 = vld [vmem:[%s955 + $0xc0] sm:$0xff]
        %v981 = vld [vmem:[%s955 + $0xc8] sm:$0xff]
        %v982 = vld [vmem:[%s955 + $0xd0] sm:$0xff]
        %v983 = vld [vmem:[%s955 + $0xd8] sm:$0xff]
        %v984 = vld [vmem:[%s955 + $0xe0] sm:$0xff]
        %v985 = vld [vmem:[%s955 + $0xe8] sm:$0xff]
        %v986 = vld [vmem:[%s955 + $0xf0] sm:$0xff]
        %v987 = vld [vmem:[%s955 + $0xf8] sm:$0xff]
        %v988 = vld [vmem:[%s955 + $0x100] sm:$0xff]
        %v989 = vld [vmem:[%s955 + $0x108] sm:$0xff]
        %v990 = vld [vmem:[%s955 + $0x110] sm:$0xff]
        %v991 = vld [vmem:[%s955 + $0x118] sm:$0xff]
        %v992 = vld [vmem:[%s955 + $0x120] sm:$0xff]
        %v993 = vld [vmem:[%s955 + $0x128] sm:$0xff]
        %v994 = vld [vmem:[%s955 + $0x130] sm:$0xff]
        %v995 = vld [vmem:[%s955 + $0x138] sm:$0xff]
        %v996 = vld [vmem:[%s955 + $0x140] sm:$0xff]
        %v997 = vld [vmem:[%s955 + $0x148] sm:$0xff]
        %v998 = vld [vmem:[%s955 + $0x150] sm:$0xff]
        %v999 = vld [vmem:[%s955 + $0x158] sm:$0xff]
        %v1000 = vld [vmem:[%s955 + $0x160] sm:$0xff]
        %v1001 = vld [vmem:[%s955 + $0x168] sm:$0xff]
        %v1002 = vld [vmem:[%s955 + $0x170] sm:$0xff]
        %v1003 = vld [vmem:[%s955 + $0x178] sm:$0xff]
        %v1004 = vld [vmem:[%s955 + $0x180] sm:$0xff]
        %v1005 = vld [vmem:[%s955 + $0x188] sm:$0xff]
        %v1006 = vld [vmem:[%s955 + $0x190] sm:$0xff]
        %v1007 = vld [vmem:[%s955 + $0x198] sm:$0xff]
        %v1008 = vld [vmem:[%s955 + $0x1a0] sm:$0xff]
        %v1009 = vld [vmem:[%s955 + $0x1a8] sm:$0xff]
        %v1010 = vld [vmem:[%s955 + $0x1b0] sm:$0xff]
        %v1011 = vld [vmem:[%s955 + $0x1b8] sm:$0xff]
        %v1012 = vld [vmem:[%s955 + $0x1c0] sm:$0xff]
        %v1013 = vld [vmem:[%s955 + $0x1c8] sm:$0xff]
        %v1014 = vld [vmem:[%s955 + $0x1d0] sm:$0xff]
        %v1015 = vld [vmem:[%s955 + $0x1d8] sm:$0xff]
        %v1016 = vld [vmem:[%s955 + $0x1e0] sm:$0xff]
        %v1017 = vld [vmem:[%s955 + $0x1e8] sm:$0xff]
        %v1018 = vld [vmem:[%s955 + $0x1f0] sm:$0xff]
        %v1019 = vld [vmem:[%s955 + $0x1f8] sm:$0xff]
        %v1020 = vld [vmem:[%s1] sm:$0xff]
        %v1021 = vld [vmem:[%s1 + $0x8] sm:$0xff]
        %v1022 = vld [vmem:[%s1 + $0x10] sm:$0xff]
        %v1023 = vld [vmem:[%s1 + $0x18] sm:$0x7]
        %v1024 = vld [vmem:[%s2] sm:$0x1]
        %v1026 = vlaneseq
        %v1027 = vshrl.u32 %v1026, 7
        %v1028 = vsub.s32 0, %v1027
        %v1029 = vrot.slane %v1024, %v1028
        %v1032 = vsel %vm244, %v956, 0
        %v1035 = vsel %vm244, %v957, 0
        %v1038 = vsel %vm244, %v958, 0
        %v1041 = vsel %vm244, %v959, 0
        %v1044 = vsel %vm244, %v960, 0
        %v1047 = vsel %vm244, %v961, 0
        %v1050 = vsel %vm244, %v962, 0
        %v1053 = vsel %vm244, %v963, 0
        %v1056 = vsel %vm244, %v964, 0
        %v1059 = vsel %vm244, %v965, 0
        %v1062 = vsel %vm244, %v966, 0
        %v1065 = vsel %vm244, %v967, 0
        %v1068 = vsel %vm244, %v968, 0
        %v1071 = vsel %vm244, %v969, 0
        %v1074 = vsel %vm244, %v970, 0
        %v1077 = vsel %vm244, %v971, 0
        %v1080 = vsel %vm244, %v972, 0
        %v1083 = vsel %vm244, %v973, 0
        %v1086 = vsel %vm244, %v974, 0
        %v1089 = vsel %vm244, %v975, 0
        %v1092 = vsel %vm244, %v976, 0
        %v1095 = vsel %vm244, %v977, 0
        %v1098 = vsel %vm244, %v978, 0
        %v1101 = vsel %vm244, %v979, 0
        %v1104 = vsel %vm244, %v980, 0
        %v1107 = vsel %vm244, %v981, 0
        %v1110 = vsel %vm244, %v982, 0
        %v1113 = vsel %vm244, %v983, 0
        %v1116 = vsel %vm244, %v984, 0
        %v1119 = vsel %vm244, %v985, 0
        %v1122 = vsel %vm244, %v986, 0
        %v1125 = vsel %vm244, %v987, 0
        %v1128 = vsel %vm244, %v988, 0
        %v1131 = vsel %vm244, %v989, 0
        %v1134 = vsel %vm244, %v990, 0
        %v1137 = vsel %vm244, %v991, 0
        %v1140 = vsel %vm244, %v992, 0
        %v1143 = vsel %vm244, %v993, 0
        %v1146 = vsel %vm244, %v994, 0
        %v1149 = vsel %vm244, %v995, 0
        %v1152 = vsel %vm244, %v996, 0
        %v1155 = vsel %vm244, %v997, 0
        %v1158 = vsel %vm244, %v998, 0
        %v1161 = vsel %vm244, %v999, 0
        %v1164 = vsel %vm244, %v1000, 0
        %v1167 = vsel %vm244, %v1001, 0
        %v1170 = vsel %vm244, %v1002, 0
        %v1173 = vsel %vm244, %v1003, 0
        %v1176 = vsel %vm244, %v1004, 0
        %v1179 = vsel %vm244, %v1005, 0
        %v1182 = vsel %vm244, %v1006, 0
        %v1185 = vsel %vm244, %v1007, 0
        %v1188 = vsel %vm244, %v1008, 0
        %v1191 = vsel %vm244, %v1009, 0
        %v1194 = vsel %vm244, %v1010, 0
        %v1197 = vsel %vm244, %v1011, 0
        %v1200 = vsel %vm244, %v1012, 0
        %v1203 = vsel %vm244, %v1013, 0
        %v1206 = vsel %vm244, %v1014, 0
        %v1209 = vsel %vm244, %v1015, 0
        %v1212 = vsel %vm244, %v1016, 0
        %v1215 = vsel %vm244, %v1017, 0
        %v1218 = vsel %vm244, %v1018, 0
        %v1221 = vsel %vm244, %v1019, 0
        %v1224 = vsel %vm437, %v1023, 0
        %1226 = vmatprep.subr.mxu0 0.0
        %1227 = vmatpush1.msra.mxu0 %v1020
        %1228 = vmatprep.subr.mxu0 0.0
        %1229 = vmatpush1.msra.mxu0 %v1021
        %1230 = vmatprep.subr.mxu0 0.0
        %1231 = vmatpush1.msra.mxu0 %v1022
        %1232 = vmatprep.subr.mxu0 0.0
        %1233 = vmatpush1.msra.mxu0 %v1224
        %1234 = vmatprep.subr.mxu0 0.0
        %1235 = vmatpush1.msra.mxu0 0.0
        %1236 = vmatprep.subr.mxu0 0.0
        %1237 = vmatpush1.msra.mxu0 0.0
        %1238 = vmatprep.subr.mxu0 0.0
        %1239 = vmatpush1.msra.mxu0 0.0
        %1240 = vmatprep.subr.mxu0 0.0
        %1241 = vmatpush1.msra.mxu0 0.0
        %1242 = vmatprep.subr.mxu0 0.0
        %1243 = vmatpush1.msra.mxu0 0.0
        %1244 = vmatprep.subr.mxu0 0.0
        %1245 = vmatpush1.msra.mxu0 0.0
        %1246 = vmatprep.subr.mxu0 0.0
        %1247 = vmatpush1.msra.mxu0 0.0
        %1248 = vmatprep.subr.mxu0 0.0
        %1249 = vmatpush1.msra.mxu0 0.0
        %1250 = vmatprep.subr.mxu0 0.0
        %1251 = vmatpush1.msra.mxu0 0.0
        %1252 = vmatprep.subr.mxu0 0.0
        %1253 = vmatpush1.msra.mxu0 0.0
        %1254 = vmatprep.subr.mxu0 0.0
        %1255 = vmatpush1.msra.mxu0 0.0
        %1256 = vmatprep.subr.mxu0 0.0
        %1257 = vmatpush1.msra.mxu0 0.0
        %1258 = vmatprep.subr.mxu0 0.0
        %1259 = vmatpush1.msra.mxu0 0.0
        %1260 = vmatprep.subr.mxu0 0.0
        %1261 = vmatpush1.msra.mxu0 0.0
        %1262 = vmatprep.subr.mxu0 0.0
        %1263 = vmatpush1.msra.mxu0 0.0
        %1264 = vmatprep.subr.mxu0 0.0
        %1265 = vmatpush1.msra.mxu0 0.0
        %1266 = vmatprep.subr.mxu0 0.0
        %1267 = vmatpush1.msra.mxu0 0.0
        %1268 = vmatprep.subr.mxu0 0.0
        %1269 = vmatpush1.msra.mxu0 0.0
        %1270 = vmatprep.subr.mxu0 0.0
        %1271 = vmatpush1.msra.mxu0 0.0
        %1272 = vmatprep.subr.mxu0 0.0
        %1273 = vmatpush1.msra.mxu0 0.0
        %1274 = vmatprep.subr.mxu0 0.0
        %1275 = vmatpush1.msra.mxu0 0.0
        %1276 = vmatprep.subr.mxu0 0.0
        %1277 = vmatpush1.msra.mxu0 0.0
        %1278 = vmatprep.subr.mxu0 0.0
        %1279 = vmatpush1.msra.mxu0 0.0
        %1280 = vmatprep.subr.mxu0 0.0
        %1281 = vmatpush1.msra.mxu0 0.0
        %1282 = vmatprep.subr.mxu0 0.0
        %1283 = vmatpush1.msra.mxu0 0.0
        %1284 = vmatprep.subr.mxu0 0.0
        %1285 = vmatpush1.msra.mxu0 0.0
        %1286 = vmatprep.subr.mxu0 0.0
        %1287 = vmatpush1.msra.mxu0 0.0
        %1288 = vmatprep.subr.mxu0 0.0
        %1289 = vmatpush1.msra.mxu0 0.0
        %1290 = vmatprep.mubr.f32.mxu0 0.0
        %1291 = vmatmul.mubr.f32.gmra.mrb[0].mxu0 %v1032
        %v1292 = vpop.f32.mrb[0].mxu0
        %v1293 = vadd.f32 %v1029, %v1292
        %v1294 = vpop.f32.mrb[0].mxu0
        %1295 = vmatprep.mubr.f32.mxu0 0.0
        %1296 = vmatmul.mubr.f32.gmra.mrb[0].mxu0 %v1035
        %v1297 = vpop.f32.mrb[0].mxu0
        %v1298 = vadd.f32 %v1029, %v1297
        %v1299 = vpop.f32.mrb[0].mxu0
        %1300 = vmatprep.mubr.f32.mxu0 0.0
        %1301 = vmatmul.mubr.f32.gmra.mrb[0].mxu0 %v1038
        %v1302 = vpop.f32.mrb[0].mxu0
        %v1303 = vadd.f32 %v1029, %v1302
        %v1304 = vpop.f32.mrb[0].mxu0
        %1305 = vmatprep.mubr.f32.mxu0 0.0
        %1306 = vmatmul.mubr.f32.gmra.mrb[0].mxu0 %v1041
        %v1307 = vpop.f32.mrb[0].mxu0
        %v1308 = vadd.f32 %v1029, %v1307
        %v1309 = vpop.f32.mrb[0].mxu0
        %1310 = vmatprep.mubr.f32.mxu0 0.0
        %1311 = vmatmul.mubr.f32.gmra.mrb[0].mxu0 %v1044
        %v1312 = vpop.f32.mrb[0].mxu0
        %v1313 = vadd.f32 %v1029, %v1312
        %v1314 = vpop.f32.mrb[0].mxu0
        %1315 = vmatprep.mubr.f32.mxu0 0.0
        %1316 = vmatmul.mubr.f32.gmra.mrb[0].mxu0 %v1047
        %v1317 = vpop.f32.mrb[0].mxu0
        %v1318 = vadd.f32 %v1029, %v1317
        %v1319 = vpop.f32.mrb[0].mxu0
        %1320 = vmatprep.mubr.f32.mxu0 0.0
        %1321 = vmatmul.mubr.f32.gmra.mrb[0].mxu0 %v1050
        %v1322 = vpop.f32.mrb[0].mxu0
        %v1323 = vadd.f32 %v1029, %v1322
        %v1324 = vpop.f32.mrb[0].mxu0
        %1325 = vmatprep.mubr.f32.mxu0 0.0
        %1326 = vmatmul.mubr.f32.gmra.mrb[0].mxu0 %v1053
        %v1327 = vpop.f32.mrb[0].mxu0
        %v1328 = vadd.f32 %v1029, %v1327
        %v1329 = vpop.f32.mrb[0].mxu0
        %1330 = vmatprep.mubr.f32.mxu0 0.0
        %1331 = vmatmul.mubr.f32.gmra.mrb[0].mxu0 %v1056
        %v1332 = vpop.f32.mrb[0].mxu0
        %v1333 = vadd.f32 %v1029, %v1332
        %v1334 = vpop.f32.mrb[0].mxu0
        %1335 = vmatprep.mubr.f32.mxu0 0.0
        %1336 = vmatmul.mubr.f32.gmra.mrb[0].mxu0 %v1059
        %v1337 = vpop.f32.mrb[0].mxu0
        %v1338 = vadd.f32 %v1029, %v1337
        %v1339 = vpop.f32.mrb[0].mxu0
        %1340 = vmatprep.mubr.f32.mxu0 0.0
        %1341 = vmatmul.mubr.f32.gmra.mrb[0].mxu0 %v1062
        %v1342 = vpop.f32.mrb[0].mxu0
        %v1343 = vadd.f32 %v1029, %v1342
        %v1344 = vpop.f32.mrb[0].mxu0
        %1345 = vmatprep.mubr.f32.mxu0 0.0
        %1346 = vmatmul.mubr.f32.gmra.mrb[0].mxu0 %v1065
        %v1347 = vpop.f32.mrb[0].mxu0
        %v1348 = vadd.f32 %v1029, %v1347
        %v1349 = vpop.f32.mrb[0].mxu0
        %1350 = vmatprep.mubr.f32.mxu0 0.0
        %1351 = vmatmul.mubr.f32.gmra.mrb[0].mxu0 %v1068
        %v1352 = vpop.f32.mrb[0].mxu0
        %v1353 = vadd.f32 %v1029, %v1352
        %v1354 = vpop.f32.mrb[0].mxu0
        %1355 = vmatprep.mubr.f32.mxu0 0.0
        %1356 = vmatmul.mubr.f32.gmra.mrb[0].mxu0 %v1071
        %v1357 = vpop.f32.mrb[0].mxu0
        %v1358 = vadd.f32 %v1029, %v1357
        %v1359 = vpop.f32.mrb[0].mxu0
        %1360 = vmatprep.mubr.f32.mxu0 0.0
        %1361 = vmatmul.mubr.f32.gmra.mrb[0].mxu0 %v1074
        %v1362 = vpop.f32.mrb[0].mxu0
        %v1363 = vadd.f32 %v1029, %v1362
        %v1364 = vpop.f32.mrb[0].mxu0
        %1365 = vmatprep.mubr.f32.mxu0 0.0
        %1366 = vmatmul.mubr.f32.gmra.mrb[0].mxu0 %v1077
        %v1367 = vpop.f32.mrb[0].mxu0
        %v1368 = vadd.f32 %v1029, %v1367
        %v1369 = vpop.f32.mrb[0].mxu0
        %1370 = vmatprep.mubr.f32.mxu0 0.0
        %1371 = vmatmul.mubr.f32.gmra.mrb[0].mxu0 %v1080
        %v1372 = vpop.f32.mrb[0].mxu0
        %v1373 = vadd.f32 %v1029, %v1372
        %v1374 = vpop.f32.mrb[0].mxu0
        %1375 = vmatprep.mubr.f32.mxu0 0.0
        %1376 = vmatmul.mubr.f32.gmra.mrb[0].mxu0 %v1083
        %v1377 = vpop.f32.mrb[0].mxu0
        %v1378 = vadd.f32 %v1029, %v1377
        %v1379 = vpop.f32.mrb[0].mxu0
        %1380 = vmatprep.mubr.f32.mxu0 0.0
        %1381 = vmatmul.mubr.f32.gmra.mrb[0].mxu0 %v1086
        %v1382 = vpop.f32.mrb[0].mxu0
        %v1383 = vadd.f32 %v1029, %v1382
        %v1384 = vpop.f32.mrb[0].mxu0
        %1385 = vmatprep.mubr.f32.mxu0 0.0
        %1386 = vmatmul.mubr.f32.gmra.mrb[0].mxu0 %v1089
        %v1387 = vpop.f32.mrb[0].mxu0
        %v1388 = vadd.f32 %v1029, %v1387
        %v1389 = vpop.f32.mrb[0].mxu0
        %1390 = vmatprep.mubr.f32.mxu0 0.0
        %1391 = vmatmul.mubr.f32.gmra.mrb[0].mxu0 %v1092
        %v1392 = vpop.f32.mrb[0].mxu0
        %v1393 = vadd.f32 %v1029, %v1392
        %v1394 = vpop.f32.mrb[0].mxu0
        %1395 = vmatprep.mubr.f32.mxu0 0.0
        %1396 = vmatmul.mubr.f32.gmra.mrb[0].mxu0 %v1095
        %v1397 = vpop.f32.mrb[0].mxu0
        %v1398 = vadd.f32 %v1029, %v1397
        %v1399 = vpop.f32.mrb[0].mxu0
        %1400 = vmatprep.mubr.f32.mxu0 0.0
        %1401 = vmatmul.mubr.f32.gmra.mrb[0].mxu0 %v1098
        %v1402 = vpop.f32.mrb[0].mxu0
        %v1403 = vadd.f32 %v1029, %v1402
        %v1404 = vpop.f32.mrb[0].mxu0
        %1405 = vmatprep.mubr.f32.mxu0 0.0
        %1406 = vmatmul.mubr.f32.gmra.mrb[0].mxu0 %v1101
        %v1407 = vpop.f32.mrb[0].mxu0
        %v1408 = vadd.f32 %v1029, %v1407
        %v1409 = vpop.f32.mrb[0].mxu0
        %1410 = vmatprep.mubr.f32.mxu0 0.0
        %1411 = vmatmul.mubr.f32.gmra.mrb[0].mxu0 %v1104
        %v1412 = vpop.f32.mrb[0].mxu0
        %v1413 = vadd.f32 %v1029, %v1412
        %v1414 = vpop.f32.mrb[0].mxu0
        %1415 = vmatprep.mubr.f32.mxu0 0.0
        %1416 = vmatmul.mubr.f32.gmra.mrb[0].mxu0 %v1107
        %v1417 = vpop.f32.mrb[0].mxu0
        %v1418 = vadd.f32 %v1029, %v1417
        %v1419 = vpop.f32.mrb[0].mxu0
        %1420 = vmatprep.mubr.f32.mxu0 0.0
        %1421 = vmatmul.mubr.f32.gmra.mrb[0].mxu0 %v1110
        %v1422 = vpop.f32.mrb[0].mxu0
        %v1423 = vadd.f32 %v1029, %v1422
        %v1424 = vpop.f32.mrb[0].mxu0
        %1425 = vmatprep.mubr.f32.mxu0 0.0
        %1426 = vmatmul.mubr.f32.gmra.mrb[0].mxu0 %v1113
        %v1427 = vpop.f32.mrb[0].mxu0
        %v1428 = vadd.f32 %v1029, %v1427
        %v1429 = vpop.f32.mrb[0].mxu0
        %1430 = vmatprep.mubr.f32.mxu0 0.0
        %1431 = vmatmul.mubr.f32.gmra.mrb[0].mxu0 %v1116
        %v1432 = vpop.f32.mrb[0].mxu0
        %v1433 = vadd.f32 %v1029, %v1432
        %v1434 = vpop.f32.mrb[0].mxu0
        %1435 = vmatprep.mubr.f32.mxu0 0.0
        %1436 = vmatmul.mubr.f32.gmra.mrb[0].mxu0 %v1119
        %v1437 = vpop.f32.mrb[0].mxu0
        %v1438 = vadd.f32 %v1029, %v1437
        %v1439 = vpop.f32.mrb[0].mxu0
        %1440 = vmatprep.mubr.f32.mxu0 0.0
        %1441 = vmatmul.mubr.f32.gmra.mrb[0].mxu0 %v1122
        %v1442 = vpop.f32.mrb[0].mxu0
        %v1443 = vadd.f32 %v1029, %v1442
        %v1444 = vpop.f32.mrb[0].mxu0
        %1445 = vmatprep.mubr.f32.mxu0 0.0
        %1446 = vmatmul.mubr.f32.gmra.mrb[0].mxu0 %v1125
        %v1447 = vpop.f32.mrb[0].mxu0
        %v1448 = vadd.f32 %v1029, %v1447
        %v1449 = vpop.f32.mrb[0].mxu0
        %1450 = vmatprep.mubr.f32.mxu0 0.0
        %1451 = vmatmul.mubr.f32.gmra.mrb[0].mxu0 %v1128
        %v1452 = vpop.f32.mrb[0].mxu0
        %v1453 = vadd.f32 %v1029, %v1452
        %v1454 = vpop.f32.mrb[0].mxu0
        %1455 = vmatprep.mubr.f32.mxu0 0.0
        %1456 = vmatmul.mubr.f32.gmra.mrb[0].mxu0 %v1131
        %v1457 = vpop.f32.mrb[0].mxu0
        %v1458 = vadd.f32 %v1029, %v1457
        %v1459 = vpop.f32.mrb[0].mxu0
        %1460 = vmatprep.mubr.f32.mxu0 0.0
        %1461 = vmatmul.mubr.f32.gmra.mrb[0].mxu0 %v1134
        %v1462 = vpop.f32.mrb[0].mxu0
        %v1463 = vadd.f32 %v1029, %v1462
        %v1464 = vpop.f32.mrb[0].mxu0
        %1465 = vmatprep.mubr.f32.mxu0 0.0
        %1466 = vmatmul.mubr.f32.gmra.mrb[0].mxu0 %v1137
        %v1467 = vpop.f32.mrb[0].mxu0
        %v1468 = vadd.f32 %v1029, %v1467
        %v1469 = vpop.f32.mrb[0].mxu0
        %1470 = vmatprep.mubr.f32.mxu0 0.0
        %1471 = vmatmul.mubr.f32.gmra.mrb[0].mxu0 %v1140
        %v1472 = vpop.f32.mrb[0].mxu0
        %v1473 = vadd.f32 %v1029, %v1472
        %v1474 = vpop.f32.mrb[0].mxu0
        %1475 = vmatprep.mubr.f32.mxu0 0.0
        %1476 = vmatmul.mubr.f32.gmra.mrb[0].mxu0 %v1143
        %v1477 = vpop.f32.mrb[0].mxu0
        %v1478 = vadd.f32 %v1029, %v1477
        %v1479 = vpop.f32.mrb[0].mxu0
        %1480 = vmatprep.mubr.f32.mxu0 0.0
        %1481 = vmatmul.mubr.f32.gmra.mrb[0].mxu0 %v1146
        %v1482 = vpop.f32.mrb[0].mxu0
        %v1483 = vadd.f32 %v1029, %v1482
        %v1484 = vpop.f32.mrb[0].mxu0
        %1485 = vmatprep.mubr.f32.mxu0 0.0
        %1486 = vmatmul.mubr.f32.gmra.mrb[0].mxu0 %v1149
        %v1487 = vpop.f32.mrb[0].mxu0
        %v1488 = vadd.f32 %v1029, %v1487
        %v1489 = vpop.f32.mrb[0].mxu0
        %1490 = vmatprep.mubr.f32.mxu0 0.0
        %1491 = vmatmul.mubr.f32.gmra.mrb[0].mxu0 %v1152
        %v1492 = vpop.f32.mrb[0].mxu0
        %v1493 = vadd.f32 %v1029, %v1492
        %v1494 = vpop.f32.mrb[0].mxu0
        %1495 = vmatprep.mubr.f32.mxu0 0.0
        %1496 = vmatmul.mubr.f32.gmra.mrb[0].mxu0 %v1155
        %v1497 = vpop.f32.mrb[0].mxu0
        %v1498 = vadd.f32 %v1029, %v1497
        %v1499 = vpop.f32.mrb[0].mxu0
        %1500 = vmatprep.mubr.f32.mxu0 0.0
        %1501 = vmatmul.mubr.f32.gmra.mrb[0].mxu0 %v1158
        %v1502 = vpop.f32.mrb[0].mxu0
        %v1503 = vadd.f32 %v1029, %v1502
        %v1504 = vpop.f32.mrb[0].mxu0
        %1505 = vmatprep.mubr.f32.mxu0 0.0
        %1506 = vmatmul.mubr.f32.gmra.mrb[0].mxu0 %v1161
        %v1507 = vpop.f32.mrb[0].mxu0
        %v1508 = vadd.f32 %v1029, %v1507
        %v1509 = vpop.f32.mrb[0].mxu0
        %1510 = vmatprep.mubr.f32.mxu0 0.0
        %1511 = vmatmul.mubr.f32.gmra.mrb[0].mxu0 %v1164
        %v1512 = vpop.f32.mrb[0].mxu0
        %v1513 = vadd.f32 %v1029, %v1512
        %v1514 = vpop.f32.mrb[0].mxu0
        %1515 = vmatprep.mubr.f32.mxu0 0.0
        %1516 = vmatmul.mubr.f32.gmra.mrb[0].mxu0 %v1167
        %v1517 = vpop.f32.mrb[0].mxu0
        %v1518 = vadd.f32 %v1029, %v1517
        %v1519 = vpop.f32.mrb[0].mxu0
        %1520 = vmatprep.mubr.f32.mxu0 0.0
        %1521 = vmatmul.mubr.f32.gmra.mrb[0].mxu0 %v1170
        %v1522 = vpop.f32.mrb[0].mxu0
        %v1523 = vadd.f32 %v1029, %v1522
        %v1524 = vpop.f32.mrb[0].mxu0
        %1525 = vmatprep.mubr.f32.mxu0 0.0
        %1526 = vmatmul.mubr.f32.gmra.mrb[0].mxu0 %v1173
        %v1527 = vpop.f32.mrb[0].mxu0
        %v1528 = vadd.f32 %v1029, %v1527
        %v1529 = vpop.f32.mrb[0].mxu0
        %1530 = vmatprep.mubr.f32.mxu0 0.0
        %1531 = vmatmul.mubr.f32.gmra.mrb[0].mxu0 %v1176
        %v1532 = vpop.f32.mrb[0].mxu0
        %v1533 = vadd.f32 %v1029, %v1532
        %v1534 = vpop.f32.mrb[0].mxu0
        %1535 = vmatprep.mubr.f32.mxu0 0.0
        %1536 = vmatmul.mubr.f32.gmra.mrb[0].mxu0 %v1179
        %v1537 = vpop.f32.mrb[0].mxu0
        %v1538 = vadd.f32 %v1029, %v1537
        %v1539 = vpop.f32.mrb[0].mxu0
        %1540 = vmatprep.mubr.f32.mxu0 0.0
        %1541 = vmatmul.mubr.f32.gmra.mrb[0].mxu0 %v1182
        %v1542 = vpop.f32.mrb[0].mxu0
        %v1543 = vadd.f32 %v1029, %v1542
        %v1544 = vpop.f32.mrb[0].mxu0
        %1545 = vmatprep.mubr.f32.mxu0 0.0
        %1546 = vmatmul.mubr.f32.gmra.mrb[0].mxu0 %v1185
        %v1547 = vpop.f32.mrb[0].mxu0
        %v1548 = vadd.f32 %v1029, %v1547
        %v1549 = vpop.f32.mrb[0].mxu0
        %1550 = vmatprep.mubr.f32.mxu0 0.0
        %1551 = vmatmul.mubr.f32.gmra.mrb[0].mxu0 %v1188
        %v1552 = vpop.f32.mrb[0].mxu0
        %v1553 = vadd.f32 %v1029, %v1552
        %v1554 = vpop.f32.mrb[0].mxu0
        %1555 = vmatprep.mubr.f32.mxu0 0.0
        %1556 = vmatmul.mubr.f32.gmra.mrb[0].mxu0 %v1191
        %v1557 = vpop.f32.mrb[0].mxu0
        %v1558 = vadd.f32 %v1029, %v1557
        %v1559 = vpop.f32.mrb[0].mxu0
        %1560 = vmatprep.mubr.f32.mxu0 0.0
        %1561 = vmatmul.mubr.f32.gmra.mrb[0].mxu0 %v1194
        %v1562 = vpop.f32.mrb[0].mxu0
        %v1563 = vadd.f32 %v1029, %v1562
        %v1564 = vpop.f32.mrb[0].mxu0
        %1565 = vmatprep.mubr.f32.mxu0 0.0
        %1566 = vmatmul.mubr.f32.gmra.mrb[0].mxu0 %v1197
        %v1567 = vpop.f32.mrb[0].mxu0
        %v1568 = vadd.f32 %v1029, %v1567
        %v1569 = vpop.f32.mrb[0].mxu0
        %1570 = vmatprep.mubr.f32.mxu0 0.0
        %1571 = vmatmul.mubr.f32.gmra.mrb[0].mxu0 %v1200
        %v1572 = vpop.f32.mrb[0].mxu0
        %v1573 = vadd.f32 %v1029, %v1572
        %v1574 = vpop.f32.mrb[0].mxu0
        %1575 = vmatprep.mubr.f32.mxu0 0.0
        %1576 = vmatmul.mubr.f32.gmra.mrb[0].mxu0 %v1203
        %v1577 = vpop.f32.mrb[0].mxu0
        %v1578 = vadd.f32 %v1029, %v1577
        %v1579 = vpop.f32.mrb[0].mxu0
        %1580 = vmatprep.mubr.f32.mxu0 0.0
        %1581 = vmatmul.mubr.f32.gmra.mrb[0].mxu0 %v1206
        %v1582 = vpop.f32.mrb[0].mxu0
        %v1583 = vadd.f32 %v1029, %v1582
        %v1584 = vpop.f32.mrb[0].mxu0
        %1585 = vmatprep.mubr.f32.mxu0 0.0
        %1586 = vmatmul.mubr.f32.gmra.mrb[0].mxu0 %v1209
        %v1587 = vpop.f32.mrb[0].mxu0
        %v1588 = vadd.f32 %v1029, %v1587
        %v1589 = vpop.f32.mrb[0].mxu0
        %1590 = vmatprep.mubr.f32.mxu0 0.0
        %1591 = vmatmul.mubr.f32.gmra.mrb[0].mxu0 %v1212
        %v1592 = vpop.f32.mrb[0].mxu0
        %v1593 = vadd.f32 %v1029, %v1592
        %v1594 = vpop.f32.mrb[0].mxu0
        %1595 = vmatprep.mubr.f32.mxu0 0.0
        %1596 = vmatmul.mubr.f32.gmra.mrb[0].mxu0 %v1215
        %v1597 = vpop.f32.mrb[0].mxu0
        %v1598 = vadd.f32 %v1029, %v1597
        %v1599 = vpop.f32.mrb[0].mxu0
        %1600 = vmatprep.mubr.f32.mxu0 0.0
        %1601 = vmatmul.mubr.f32.gmra.mrb[0].mxu0 %v1218
        %v1602 = vpop.f32.mrb[0].mxu0
        %v1603 = vadd.f32 %v1029, %v1602
        %v1604 = vpop.f32.mrb[0].mxu0
        %1605 = vmatprep.mubr.f32.mxu0 0.0
        %1606 = vmatmul.mubr.f32.gmra.mrb[0].mxu0 %v1221
        %v1607 = vpop.f32.mrb[0].mxu0
        %v1608 = vadd.f32 %v1029, %v1607
        %v1609 = vpop.f32.mrb[0].mxu0
        %1610 = vdwg.mxu0
        %v1611 = vmax.f32 %v1293, 0.0
        %v1612 = vmax.f32 %v1298, 0.0
        %v1613 = vmax.f32 %v1303, 0.0
        %v1614 = vmax.f32 %v1308, 0.0
        %v1615 = vmax.f32 %v1313, 0.0
        %v1616 = vmax.f32 %v1318, 0.0
        %v1617 = vmax.f32 %v1323, 0.0
        %v1618 = vmax.f32 %v1328, 0.0
        %v1619 = vmax.f32 %v1333, 0.0
        %v1620 = vmax.f32 %v1338, 0.0
        %v1621 = vmax.f32 %v1343, 0.0
        %v1622 = vmax.f32 %v1348, 0.0
        %v1623 = vmax.f32 %v1353, 0.0
        %v1624 = vmax.f32 %v1358, 0.0
        %v1625 = vmax.f32 %v1363, 0.0
        %v1626 = vmax.f32 %v1368, 0.0
        %v1627 = vmax.f32 %v1373, 0.0
        %v1628 = vmax.f32 %v1378, 0.0
        %v1629 = vmax.f32 %v1383, 0.0
        %v1630 = vmax.f32 %v1388, 0.0
        %v1631 = vmax.f32 %v1393, 0.0
        %v1632 = vmax.f32 %v1398, 0.0
        %v1633 = vmax.f32 %v1403, 0.0
        %v1634 = vmax.f32 %v1408, 0.0
        %v1635 = vmax.f32 %v1413, 0.0
        %v1636 = vmax.f32 %v1418, 0.0
        %v1637 = vmax.f32 %v1423, 0.0
        %v1638 = vmax.f32 %v1428, 0.0
        %v1639 = vmax.f32 %v1433, 0.0
        %v1640 = vmax.f32 %v1438, 0.0
        %v1641 = vmax.f32 %v1443, 0.0
        %v1642 = vmax.f32 %v1448, 0.0
        %v1643 = vmax.f32 %v1453, 0.0
        %v1644 = vmax.f32 %v1458, 0.0
        %v1645 = vmax.f32 %v1463, 0.0
        %v1646 = vmax.f32 %v1468, 0.0
        %v1647 = vmax.f32 %v1473, 0.0
        %v1648 = vmax.f32 %v1478, 0.0
        %v1649 = vmax.f32 %v1483, 0.0
        %v1650 = vmax.f32 %v1488, 0.0
        %v1651 = vmax.f32 %v1493, 0.0
        %v1652 = vmax.f32 %v1498, 0.0
        %v1653 = vmax.f32 %v1503, 0.0
        %v1654 = vmax.f32 %v1508, 0.0
        %v1655 = vmax.f32 %v1513, 0.0
        %v1656 = vmax.f32 %v1518, 0.0
        %v1657 = vmax.f32 %v1523, 0.0
        %v1658 = vmax.f32 %v1528, 0.0
        %v1659 = vmax.f32 %v1533, 0.0
        %v1660 = vmax.f32 %v1538, 0.0
        %v1661 = vmax.f32 %v1543, 0.0
        %v1662 = vmax.f32 %v1548, 0.0
        %v1663 = vmax.f32 %v1553, 0.0
        %v1664 = vmax.f32 %v1558, 0.0
        %v1665 = vmax.f32 %v1563, 0.0
        %v1666 = vmax.f32 %v1568, 0.0
        %v1667 = vmax.f32 %v1573, 0.0
        %v1668 = vmax.f32 %v1578, 0.0
        %v1669 = vmax.f32 %v1583, 0.0
        %v1670 = vmax.f32 %v1588, 0.0
        %v1671 = vmax.f32 %v1593, 0.0
        %v1672 = vmax.f32 %v1598, 0.0
        %v1673 = vmax.f32 %v1603, 0.0
        %v1674 = vmax.f32 %v1608, 0.0
        %s1675 = scalar_lea.vmem %s163, 512 [#allocation2]
        %1676 = vst.msk [vmem:[%s1675] sm:$0xff] %vm890, %v1611
        %1677 = vst.msk [vmem:[%s1675 + $0x8] sm:$0xff] %vm890, %v1612
        %1678 = vst.msk [vmem:[%s1675 + $0x10] sm:$0xff] %vm890, %v1613
        %1679 = vst.msk [vmem:[%s1675 + $0x18] sm:$0xff] %vm890, %v1614
        %1680 = vst.msk [vmem:[%s1675 + $0x20] sm:$0xff] %vm890, %v1615
        %1681 = vst.msk [vmem:[%s1675 + $0x28] sm:$0xff] %vm890, %v1616
        %1682 = vst.msk [vmem:[%s1675 + $0x30] sm:$0xff] %vm890, %v1617
        %1683 = vst.msk [vmem:[%s1675 + $0x38] sm:$0xff] %vm890, %v1618
        %1684 = vst.msk [vmem:[%s1675 + $0x40] sm:$0xff] %vm890, %v1619
        %1685 = vst.msk [vmem:[%s1675 + $0x48] sm:$0xff] %vm890, %v1620
        %1686 = vst.msk [vmem:[%s1675 + $0x50] sm:$0xff] %vm890, %v1621
        %1687 = vst.msk [vmem:[%s1675 + $0x58] sm:$0xff] %vm890, %v1622
        %1688 = vst.msk [vmem:[%s1675 + $0x60] sm:$0xff] %vm890, %v1623
        %1689 = vst.msk [vmem:[%s1675 + $0x68] sm:$0xff] %vm890, %v1624
        %1690 = vst.msk [vmem:[%s1675 + $0x70] sm:$0xff] %vm890, %v1625
        %1691 = vst.msk [vmem:[%s1675 + $0x78] sm:$0xff] %vm890, %v1626
        %1692 = vst.msk [vmem:[%s1675 + $0x80] sm:$0xff] %vm890, %v1627
        %1693 = vst.msk [vmem:[%s1675 + $0x88] sm:$0xff] %vm890, %v1628
        %1694 = vst.msk [vmem:[%s1675 + $0x90] sm:$0xff] %vm890, %v1629
        %1695 = vst.msk [vmem:[%s1675 + $0x98] sm:$0xff] %vm890, %v1630
        %1696 = vst.msk [vmem:[%s1675 + $0xa0] sm:$0xff] %vm890, %v1631
        %1697 = vst.msk [vmem:[%s1675 + $0xa8] sm:$0xff] %vm890, %v1632
        %1698 = vst.msk [vmem:[%s1675 + $0xb0] sm:$0xff] %vm890, %v1633
        %1699 = vst.msk [vmem:[%s1675 + $0xb8] sm:$0xff] %vm890, %v1634
        %1700 = vst.msk [vmem:[%s1675 + $0xc0] sm:$0xff] %vm890, %v1635
        %1701 = vst.msk [vmem:[%s1675 + $0xc8] sm:$0xff] %vm890, %v1636
        %1702 = vst.msk [vmem:[%s1675 + $0xd0] sm:$0xff] %vm890, %v1637
        %1703 = vst.msk [vmem:[%s1675 + $0xd8] sm:$0xff] %vm890, %v1638
        %1704 = vst.msk [vmem:[%s1675 + $0xe0] sm:$0xff] %vm890, %v1639
        %1705 = vst.msk [vmem:[%s1675 + $0xe8] sm:$0xff] %vm890, %v1640
        %1706 = vst.msk [vmem:[%s1675 + $0xf0] sm:$0xff] %vm890, %v1641
        %1707 = vst.msk [vmem:[%s1675 + $0xf8] sm:$0xff] %vm890, %v1642
        %1708 = vst.msk [vmem:[%s1675 + $0x100] sm:$0xff] %vm890, %v1643
        %1709 = vst.msk [vmem:[%s1675 + $0x108] sm:$0xff] %vm890, %v1644
        %1710 = vst.msk [vmem:[%s1675 + $0x110] sm:$0xff] %vm890, %v1645
        %1711 = vst.msk [vmem:[%s1675 + $0x118] sm:$0xff] %vm890, %v1646
        %1712 = vst.msk [vmem:[%s1675 + $0x120] sm:$0xff] %vm890, %v1647
        %1713 = vst.msk [vmem:[%s1675 + $0x128] sm:$0xff] %vm890, %v1648
        %1714 = vst.msk [vmem:[%s1675 + $0x130] sm:$0xff] %vm890, %v1649
        %1715 = vst.msk [vmem:[%s1675 + $0x138] sm:$0xff] %vm890, %v1650
        %1716 = vst.msk [vmem:[%s1675 + $0x140] sm:$0xff] %vm890, %v1651
        %1717 = vst.msk [vmem:[%s1675 + $0x148] sm:$0xff] %vm890, %v1652
        %1718 = vst.msk [vmem:[%s1675 + $0x150] sm:$0xff] %vm890, %v1653
        %1719 = vst.msk [vmem:[%s1675 + $0x158] sm:$0xff] %vm890, %v1654
        %1720 = vst.msk [vmem:[%s1675 + $0x160] sm:$0xff] %vm890, %v1655
        %1721 = vst.msk [vmem:[%s1675 + $0x168] sm:$0xff] %vm890, %v1656
        %1722 = vst.msk [vmem:[%s1675 + $0x170] sm:$0xff] %vm890, %v1657
        %1723 = vst.msk [vmem:[%s1675 + $0x178] sm:$0xff] %vm890, %v1658
        %1724 = vst.msk [vmem:[%s1675 + $0x180] sm:$0xff] %vm890, %v1659
        %1725 = vst.msk [vmem:[%s1675 + $0x188] sm:$0xff] %vm890, %v1660
        %1726 = vst.msk [vmem:[%s1675 + $0x190] sm:$0xff] %vm890, %v1661
        %1727 = vst.msk [vmem:[%s1675 + $0x198] sm:$0xff] %vm890, %v1662
        %1728 = vst.msk [vmem:[%s1675 + $0x1a0] sm:$0xff] %vm890, %v1663
        %1729 = vst.msk [vmem:[%s1675 + $0x1a8] sm:$0xff] %vm890, %v1664
        %1730 = vst.msk [vmem:[%s1675 + $0x1b0] sm:$0xff] %vm890, %v1665
        %1731 = vst.msk [vmem:[%s1675 + $0x1b8] sm:$0xff] %vm890, %v1666
        %1732 = vst.msk [vmem:[%s1675 + $0x1c0] sm:$0xff] %vm890, %v1667
        %1733 = vst.msk [vmem:[%s1675 + $0x1c8] sm:$0xff] %vm890, %v1668
        %1734 = vst.msk [vmem:[%s1675 + $0x1d0] sm:$0xff] %vm890, %v1669
        %1735 = vst.msk [vmem:[%s1675 + $0x1d8] sm:$0xff] %vm890, %v1670
        %1736 = vst.msk [vmem:[%s1675 + $0x1e0] sm:$0xff] %vm890, %v1671
        %1737 = vst.msk [vmem:[%s1675 + $0x1e8] sm:$0xff] %vm890, %v1672
        %1738 = vst.msk [vmem:[%s1675 + $0x1f0] sm:$0xff] %vm890, %v1673
        %1739 = vst.msk [vmem:[%s1675 + $0x1f8] sm:$0xff] %vm890, %v1674
        %s1740 = sand.u32 %s93, 1
        %s1741 = scalar_lea.sflag [#allocation3], %s1740
        %s1742 = sand.u32 %s93, 1
        %s1743 = smul.addr %s1742, 1024
        %s1744 = scalar_lea.vmem [#allocation2], %s1743
        // Predicated region
        $region33: #{tpu_custom_call.1} parent=31 // pred_check
          %p1745 = pneg %p103
        $region34: #{tpu_custom_call.1} parent=31 // pred_check_branch
          %1747 = sbr.rel (%p1745) target = $region36
        $region35: #{tpu_custom_call.1} parent=31 // pred_region
          %s1749 = ssub.s32 16384, 16384
          %1750 = vsyncadd %s1741, %s1749
          %s1751 = smul.addr %s17, 128
          %s1752 = smul.addr %s1751, 128
          %s1753 = scalar_lea.hbm %s3, %s1752
          %s1754 = sshll.u32 %s1744, 4
          %s1755 = int_to_ptr.vmem [resolvable:$true] %s1754
          %1760 = dma.vmem_to_hbm [thread:$0]  %s1755, 16384, %s1753, %s1741, 128, 128, 8
        $region36: #{tpu_custom_call.1} parent=31 // pred_fallthru
          _
      $region32: #{tpu_custom_call.1} parent=5 // pred_fallthru
        _
      %p1761 = scmp.le.s32.totalorder 2, %s12
      // Predicated region
      $region37: #{tpu_custom_call.1} parent=5 // pred_check
        %p1762 = pneg %p1761
      $region38: #{tpu_custom_call.1} parent=5 // pred_check_branch
        %1764 = sbr.rel (%p1762) target = $region40
      $region39: #{tpu_custom_call.1} parent=5 // pred_region
        %s1765 = ssub.s32 %s12, 2
        // Predicated region
        $region41: #{tpu_custom_call.1} parent=39 // pred_check
          %p1766 = pneg %p109
        $region42: #{tpu_custom_call.1} parent=39 // pred_check_branch
          %1768 = sbr.rel (%p1766) target = $region44
        $region43: #{tpu_custom_call.1} parent=39 // pred_region
          %s1769 = sand.u32 %s94, 1
          %s1770 = scalar_lea.sflag [#allocation3], %s1769
          %s1771 = sand.u32 %s94, 1
          %s1772 = smul.addr %s1771, 1024
          %s1773 = scalar_lea.vmem [#allocation2], %s1772
          %1774 = dma.done %s1770, 16384
        $region44: #{tpu_custom_call.1} parent=39 // pred_fallthru
          _
      $region40: #{tpu_custom_call.1} parent=5 // pred_fallthru
        _
    $region6: #{tpu_custom_call.1} parent=1 // loop_footer
      %s16 = sadd.s32 1, %s12
    $region7: #{tpu_custom_call.1} parent=1 // loop_footer_branch
      %11 = sbr.rel target = $region3
    $region8: #{tpu_custom_call.1} parent=1 // loop_exit
      _
    %1775 = vsyncpa [#allocation3], 1
    %s1776 = scalar_lea.sflag [#allocation3], 1
    %1777 = vsyncpa %s1776, 1

</llo_original>
